<compile_context>
chip_gen: v7x
topology: tpu7x:2x2x1
jax: 0.10.0
libtpu: 0.0.40
codegen_flags: <defaults>
</compile_context>

<pallas_src>
import jax
import jax.numpy as jnp
from jax.experimental import pallas as pl
from jax.experimental.pallas import tpu as pltpu

# ----------------------- small, module-consistent configuration -----------------------
B = 2            # batch
N = 16           # number of graspable seed points
NSAMPLE = 16     # nsample (points per cylinder group)
SEED_DIM = 32    # seed_feature_dim
CIN = 3 + SEED_DIM            # 35
CIN_PAD = 128                 # K padded to one lane width; lane CIN carries the bias-1 ones
HIDDEN = 256                  # CloudCrop hard-codes mlps = [3 + in_dim, 256, 256]
RADIUS = 0.05    # cylinder_radius
HMIN = -0.02
HMAX = 0.04
BN_EPS = 1e-5


def _num_grid_steps(n_points):
    """2 parallel grid steps on dual-TensorCore chips (v7x); one big step on v5e/v6e."""
    try:
        kind = jax.devices()[0].device_kind.lower()
        two_tc = "v7" in kind
    except Exception:
        two_tc = False
    steps = 2 if two_tc else 1
    if n_points % steps != 0 or (n_points // steps) % 8 != 0:
        steps = 1
    return steps


NUM_STEPS = _num_grid_steps(B * N)     # 1 on v5e/v6e (TPP=32), 2 on v7x (TPP=16 per core)


# ---------------------------------- Pallas kernel --------------------------------------
def _make_mlp_maxpool_kernel(tpp, spc, nchunk):
    """SharedMLP (two 1x1 convs, folded BN, ReLU) + nsample max-pool, chunk-streamed."""

    def kernel(x_ref, w1_ref, w2_ref, b2_ref, o_ref):
        # x_ref : (NSAMPLE, tpp, CIN_PAD) bf16  sample-major rows; lane CIN is a constant 1
        # w1_ref: (CIN_PAD, HIDDEN)       bf16  BN scale + layer-1 bias folded in, zero K rows
        # w2_ref: (HIDDEN, HIDDEN)        bf16  BN scale folded in
        # b2_ref: (8, HIDDEN)             f32   row 0 = layer-2 bias
        # o_ref : (tpp, HIDDEN)           f32
        acc = None
        for c in range(nchunk):
            # per-chunk MLP keeps the live f32 intermediate at (spc*tpp, 256) instead of the
            # full (NSAMPLE*tpp, 256) block that would eat / spill the whole vreg file.
            xc = x_ref[c * spc:(c + 1) * spc].reshape(spc * tpp, CIN_PAD)
            h = jnp.dot(xc, w1_ref[...], preferred_element_type=jnp.float32)
            h = jnp.maximum(h, 0.0).astype(jnp.bfloat16)          # bias-1 already in the matmul
            h = jnp.dot(h, w2_ref[...], preferred_element_type=jnp.float32)
            # reduce the spc samples of this chunk with a pairwise-maximum tree over
            # contiguous sublane halves (rows are sample-major: row = s*tpp + p; VPU only).
            cur = spc
            while cur > 1:
                half = cur // 2
                h = jnp.maximum(h[: half * tpp, :], h[half * tpp: cur * tpp, :])
                cur = half
            acc = h if acc is None else jnp.maximum(acc, h)       # eager max-combine
        # bias-2 + ReLU commute with max -> apply once on the final (tpp, HIDDEN) block only.
        o_ref[...] = jnp.maximum(acc + b2_ref[0:1, :], 0.0)

    return kernel


def shared_mlp_maxpool(x_grp, w1_eff, w2_eff, b2_blk, num_steps):
    """x_grp: (NSAMPLE, n_points, CIN_PAD) bf16 sample-major. Returns (n_points, HIDDEN) f32."""
    nsample, n_points, cin_pad = x_grp.shape
    assert nsample == NSAMPLE and cin_pad == CIN_PAD
    assert n_points % num_steps == 0
    tpp = n_points // num_steps
    assert tpp % 8 == 0
    spc = max(1, min(nsample, 64 // tpp))       # samples per chunk -> >= 64 MXU rows per matmul
    while nsample % spc:
        spc //= 2
    nchunk = nsample // spc

    kernel = _make_mlp_maxpool_kernel(tpp, spc, nchunk)
    return pl.pallas_call(
        kernel,
        out_shape=jax.ShapeDtypeStruct((n_points, HIDDEN), jnp.float32),
        grid_spec=pltpu.PrefetchScalarGridSpec(
            num_scalar_prefetch=0,
            grid=(num_steps,),
            in_specs=[
                pl.BlockSpec((NSAMPLE, tpp, CIN_PAD), lambda i: (0, i, 0)),
                pl.BlockSpec((CIN_PAD, HIDDEN), lambda i: (0, 0)),
                pl.BlockSpec((HIDDEN, HIDDEN), lambda i: (0, 0)),
                pl.BlockSpec((8, HIDDEN), lambda i: (0, 0)),
            ],
            out_specs=pl.BlockSpec((tpp, HIDDEN), lambda i: (i, 0)),
        ),
        compiler_params=pltpu.CompilerParams(dimension_semantics=("parallel",)),
    )(x_grp, w1_eff, w2_eff, b2_blk)


# ------------------------- CylinderQueryAndGroup (JAX glue) ----------------------------
# TODO(synk): the sequential, data-dependent cylinder_query + per-row index gather has no clean
# tile-regular Pallas equivalent (the gathered rows are a scatter over all points, not a
# contiguous dynamic slab), so it is reproduced exactly (CUDA fill semantics) in plain JAX and
# fused by XLA under jit; fusing it into the kernel via scalar-prefetched idx + in-kernel DMA
# gather is possible but was judged not worth the risk at these sizes.
def cylinder_query_and_group(xyz, features, rot):
    # xyz: (B, N, 3), features: (B, C, N), rot: (B, N, 3, 3)  ->  (B, N, NSAMPLE, 3+C)
    npts = xyz.shape[1]
    d = xyz[:, None, :, :] - xyz[:, :, None, :]                # (B, Nq, Np, 3): xyz[k]-new_xyz[j]
    d_rot = jnp.einsum("bjkd,bjde->bjke", d, rot)              # d @ R (matches CUDA r0*x+r3*y+r6*z)
    x_r, y_r, z_r = d_rot[..., 0], d_rot[..., 1], d_rot[..., 2]
    mask = (y_r * y_r + z_r * z_r < RADIUS * RADIUS) & (x_r > HMIN) & (x_r < HMAX)

    ar = jnp.arange(npts, dtype=jnp.int32)
    key = jnp.where(mask, ar, npts + ar)                       # valid indices sort first, ascending
    order = jnp.argsort(key, axis=-1).astype(jnp.int32)        # (B, Nq, Np)
    cnt = mask.sum(axis=-1)                                    # (B, Nq)
    idx = order[..., :NSAMPLE]                                 # first nsample valid hits
    first = order[..., :1]                                     # first hit fills remaining slots
    slot = jnp.arange(NSAMPLE, dtype=jnp.int32)
    idx = jnp.where(slot[None, None, :] < cnt[..., None], idx, first)
    # empty group: idx stays 0, i.e. point 0 is gathered (matches the zero-initialized CUDA
    # idx buffer, NOT literal zero features).
    idx = jnp.where(cnt[..., None] > 0, idx, 0)

    grouped_xyz = jax.vmap(lambda p, i: p[i])(xyz, idx)        # (B, Nq, NS, 3)
    feat_nlast = jnp.transpose(features, (0, 2, 1))            # (B, Np, C)  (tiny relayout)
    grouped_feat = jax.vmap(lambda f, i: f[i])(feat_nlast, idx)  # (B, Nq, NS, C) channels-last

    grouped_xyz = (grouped_xyz - xyz[:, :, None, :]) / RADIUS  # center + normalize_xyz
    grouped_xyz = jnp.einsum("bjsd,bjde->bjse", grouped_xyz, rot)  # rotate_xyz (d @ R)
    return jnp.concatenate([grouped_xyz, grouped_feat], axis=-1)   # (B, Nq, NS, 3+C)


# ---------------------- one-time parameter prep (done at load time) --------------------
def fold_params(params):
    """Fold eval-mode BN into the conv weights once: transposed, K-padded, bias-1 written into
    the constant-1 lane of w1, bias-2 packed into an (8, HIDDEN) block, bf16 cast."""
    (w1, s1, b1), (w2, s2, b2) = params
    w1_eff = jnp.zeros((CIN_PAD, HIDDEN), jnp.float32)
    w1_eff = w1_eff.at[:CIN].set(w1.T * s1[None, :]).at[CIN].set(b1)   # bias-1 rides the MXU
    w2_eff = w2.T * s2[None, :]
    b2_blk = jnp.zeros((8, HIDDEN), jnp.float32).at[0].set(b2)
    return (w1_eff.astype(jnp.bfloat16), w2_eff.astype(jnp.bfloat16), b2_blk)


# ------------------------------- CloudCrop forward -------------------------------------
def cloudcrop_forward(seed_xyz, seed_features, vp_rot, folded):
    w1_eff, w2_eff, b2_blk = folded
    grouped = cylinder_query_and_group(seed_xyz, seed_features, vp_rot)   # (B, N, NS, CIN)

    # sample-major layout for the in-kernel contiguous-slice max tree: (NS, B*N, CIN_PAD) bf16.
    # Lane CIN is set to 1 so layer-1's BN bias is folded into the first matmul.
    x = jnp.transpose(grouped, (2, 0, 1, 3)).reshape(NSAMPLE, B * N, CIN)
    x = jnp.pad(x, ((0, 0), (0, 0), (0, CIN_PAD - CIN)))
    x = x.at[:, :, CIN].set(1.0)
    x = x.astype(jnp.bfloat16)

    out = shared_mlp_maxpool(x, w1_eff, w2_eff, b2_blk, NUM_STEPS)        # (B*N, HIDDEN)
    return jnp.transpose(out.reshape(B, N, HIDDEN), (0, 2, 1))            # (B, 256, N)


def cloudcrop_reference(seed_xyz, seed_features, vp_rot, params):
    """Pure-JAX f32 reference mirroring the PyTorch NCHW conv/bn/relu/maxpool path."""
    g = cylinder_query_and_group(seed_xyz, seed_features, vp_rot)         # (B, N, NS, CIN)
    x = jnp.transpose(g, (0, 3, 1, 2))                                    # (B, CIN, N, NS)
    for (w, s, bb) in params:
        x = jnp.einsum("oc,bcns->bons", w, x)                             # 1x1 conv, no bias
        x = jnp.maximum(x * s[None, :, None, None] + bb[None, :, None, None], 0.0)
    return jnp.max(x, axis=-1)                                            # (B, 256, N)


# ------------------------------- deterministic params ----------------------------------
def make_params(key):
    ks = jax.random.split(key, 10)

    def bn_fold(kg, kb, km, kv, ch):
        gamma = 1.0 + 0.1 * jax.random.normal(kg, (ch,), jnp.float32)
        beta = 0.1 * jax.random.normal(kb, (ch,), jnp.float32)
        mean = 0.05 * jax.random.normal(km, (ch,), jnp.float32)
        var = jax.random.uniform(kv, (ch,), jnp.float32, 0.5, 1.5)
        scale = gamma / jnp.sqrt(var + BN_EPS)
        bias = beta - mean * scale
        return scale, bias

    w1 = 0.05 * jax.random.normal(ks[0], (HIDDEN, CIN), jnp.float32)
    s1, b1 = bn_fold(ks[1], ks[2], ks[3], ks[4], HIDDEN)
    w2 = 0.05 * jax.random.normal(ks[5], (HIDDEN, HIDDEN), jnp.float32)
    s2, b2 = bn_fold(ks[6], ks[7], ks[8], ks[9], HIDDEN)
    return ((w1, s1, b1), (w2, s2, b2))


if __name__ == "__main__":
    root = jax.random.PRNGKey(0)
    k_xyz, k_feat, k_rot, k_par = jax.random.split(root, 4)

    # inputs: seed_xyz (B, N, 3), seed_features (B, C, N), vp_rot (B, N, 3, 3)
    seed_xyz = jax.random.uniform(k_xyz, (B, N, 3), jnp.float32, -0.06, 0.06)
    seed_features = jax.random.normal(k_feat, (B, SEED_DIM, N), jnp.float32)
    rot_raw = jax.random.normal(k_rot, (B, N, 3, 3), jnp.float32)
    vp_rot, _ = jnp.linalg.qr(rot_raw)                                     # orthonormal view rots

    params = make_params(k_par)
    folded = fold_params(params)          # one-time BN fold / pad / cast, NOT per forward call

    fwd = jax.jit(cloudcrop_forward)
    out = jax.block_until_ready(fwd(seed_xyz, seed_features, vp_rot, folded))
    assert out.shape == (B, HIDDEN, N), out.shape

    ref = jax.block_until_ready(cloudcrop_reference(seed_xyz, seed_features, vp_rot, params))
    # bf16 MXU matmuls with f32 accumulation vs. an all-f32 reference
    assert jnp.allclose(out, ref, rtol=2e-2, atol=2e-2), float(jnp.max(jnp.abs(out - ref)))

    print("KERNEL_OK")
</pallas_src>

<mosaic_0001>
module attributes {stable_mosaic.version = 11 : i64} {
  func.func @kernel(%arg0: i32, %arg1: memref<16x32x128xbf16, #tpu.memory_space<vmem>>, %arg2: memref<128x256xbf16, #tpu.memory_space<vmem>>, %arg3: memref<256x256xbf16, #tpu.memory_space<vmem>>, %arg4: memref<8x256xf32, #tpu.memory_space<vmem>>, %arg5: memref<32x256xf32, #tpu.memory_space<vmem>>) attributes {dimension_semantics = [#tpu.dimension_semantics<parallel>], iteration_bounds = array<i64: 1>, scalar_prefetch = 0 : i64, scratch_operands = 0 : i64, tpu.core_type = #tpu.core_type<tc>, window_params = [{transform_indices = @transform_0, window_bounds = array<i64: 16, 32, 128>}, {pipeline_mode = #tpu.pipeline_mode<synchronous>, transform_indices = @transform_1, window_bounds = array<i64: 128, 256>}, {pipeline_mode = #tpu.pipeline_mode<synchronous>, transform_indices = @transform_2, window_bounds = array<i64: 256, 256>}, {pipeline_mode = #tpu.pipeline_mode<synchronous>, transform_indices = @transform_3, window_bounds = array<i64: 8, 256>}, {transform_indices = @transform_4, window_bounds = array<i64: 32, 256>}]} {
    %c0 = arith.constant 0 : index
    %c0_0 = arith.constant 0 : index
    %c0_1 = arith.constant 0 : index
    %0 = vector.load %arg1[%c0, %c0_0, %c0_1] : memref<16x32x128xbf16, #tpu.memory_space<vmem>>, vector<2x32x128xbf16>
    %1 = vector.shape_cast %0 : vector<2x32x128xbf16> to vector<64x128xbf16>
    %c0_2 = arith.constant 0 : index
    %c0_3 = arith.constant 0 : index
    %2 = vector.load %arg2[%c0_2, %c0_3] : memref<128x256xbf16, #tpu.memory_space<vmem>>, vector<128x256xbf16>
    %cst = arith.constant dense<0.000000e+00> : vector<64x256xf32>
    %3 = tpu.matmul %1, %2, %cst {dimension_numbers = #tpu.dot_dimension_numbers<[1], [0], [0], [1], [0, 0, 1, 1], [], []>} : vector<64x128xbf16>, vector<128x256xbf16>, vector<64x256xf32> -> vector<64x256xf32>
    %cst_4 = arith.constant 0.000000e+00 : f32
    %4 = vector.broadcast %cst_4 : f32 to vector<64x256xf32>
    %5 = arith.maximumf %3, %4 : vector<64x256xf32>
    %6 = arith.truncf %5 : vector<64x256xf32> to vector<64x256xbf16>
    %c0_5 = arith.constant 0 : index
    %c0_6 = arith.constant 0 : index
    %7 = vector.load %arg3[%c0_5, %c0_6] : memref<256x256xbf16, #tpu.memory_space<vmem>>, vector<256x256xbf16>
    %cst_7 = arith.constant dense<0.000000e+00> : vector<64x256xf32>
    %8 = tpu.matmul %6, %7, %cst_7 {dimension_numbers = #tpu.dot_dimension_numbers<[1], [0], [0], [1], [0, 0, 1, 1], [], []>} : vector<64x256xbf16>, vector<256x256xbf16>, vector<64x256xf32> -> vector<64x256xf32>
    %9 = vector.extract_strided_slice %8 {offsets = [0, 0], sizes = [32, 256], strides = [1, 1]} : vector<64x256xf32> to vector<32x256xf32>
    %10 = vector.extract_strided_slice %8 {offsets = [32, 0], sizes = [32, 256], strides = [1, 1]} : vector<64x256xf32> to vector<32x256xf32>
    %11 = arith.maximumf %9, %10 : vector<32x256xf32>
    %c2 = arith.constant 2 : index
    %c0_8 = arith.constant 0 : index
    %c0_9 = arith.constant 0 : index
    %12 = vector.load %arg1[%c2, %c0_8, %c0_9] : memref<16x32x128xbf16, #tpu.memory_space<vmem>>, vector<2x32x128xbf16>
    %13 = vector.shape_cast %12 : vector<2x32x128xbf16> to vector<64x128xbf16>
    %c0_10 = arith.constant 0 : index
    %c0_11 = arith.constant 0 : index
    %14 = vector.load %arg2[%c0_10, %c0_11] : memref<128x256xbf16, #tpu.memory_space<vmem>>, vector<128x256xbf16>
    %cst_12 = arith.constant dense<0.000000e+00> : vector<64x256xf32>
    %15 = tpu.matmul %13, %14, %cst_12 {dimension_numbers = #tpu.dot_dimension_numbers<[1], [0], [0], [1], [0, 0, 1, 1], [], []>} : vector<64x128xbf16>, vector<128x256xbf16>, vector<64x256xf32> -> vector<64x256xf32>
    %cst_13 = arith.constant 0.000000e+00 : f32
    %16 = vector.broadcast %cst_13 : f32 to vector<64x256xf32>
    %17 = arith.maximumf %15, %16 : vector<64x256xf32>
    %18 = arith.truncf %17 : vector<64x256xf32> to vector<64x256xbf16>
    %c0_14 = arith.constant 0 : index
    %c0_15 = arith.constant 0 : index
    %19 = vector.load %arg3[%c0_14, %c0_15] : memref<256x256xbf16, #tpu.memory_space<vmem>>, vector<256x256xbf16>
    %cst_16 = arith.constant dense<0.000000e+00> : vector<64x256xf32>
    %20 = tpu.matmul %18, %19, %cst_16 {dimension_numbers = #tpu.dot_dimension_numbers<[1], [0], [0], [1], [0, 0, 1, 1], [], []>} : vector<64x256xbf16>, vector<256x256xbf16>, vector<64x256xf32> -> vector<64x256xf32>
    %21 = vector.extract_strided_slice %20 {offsets = [0, 0], sizes = [32, 256], strides = [1, 1]} : vector<64x256xf32> to vector<32x256xf32>
    %22 = vector.extract_strided_slice %20 {offsets = [32, 0], sizes = [32, 256], strides = [1, 1]} : vector<64x256xf32> to vector<32x256xf32>
    %23 = arith.maximumf %21, %22 : vector<32x256xf32>
    %24 = arith.maximumf %11, %23 : vector<32x256xf32>
    %c4 = arith.constant 4 : index
    %c0_17 = arith.constant 0 : index
    %c0_18 = arith.constant 0 : index
    %25 = vector.load %arg1[%c4, %c0_17, %c0_18] : memref<16x32x128xbf16, #tpu.memory_space<vmem>>, vector<2x32x128xbf16>
    %26 = vector.shape_cast %25 : vector<2x32x128xbf16> to vector<64x128xbf16>
    %c0_19 = arith.constant 0 : index
    %c0_20 = arith.constant 0 : index
    %27 = vector.load %arg2[%c0_19, %c0_20] : memref<128x256xbf16, #tpu.memory_space<vmem>>, vector<128x256xbf16>
    %cst_21 = arith.constant dense<0.000000e+00> : vector<64x256xf32>
    %28 = tpu.matmul %26, %27, %cst_21 {dimension_numbers = #tpu.dot_dimension_numbers<[1], [0], [0], [1], [0, 0, 1, 1], [], []>} : vector<64x128xbf16>, vector<128x256xbf16>, vector<64x256xf32> -> vector<64x256xf32>
    %cst_22 = arith.constant 0.000000e+00 : f32
    %29 = vector.broadcast %cst_22 : f32 to vector<64x256xf32>
    %30 = arith.maximumf %28, %29 : vector<64x256xf32>
    %31 = arith.truncf %30 : vector<64x256xf32> to vector<64x256xbf16>
    %c0_23 = arith.constant 0 : index
    %c0_24 = arith.constant 0 : index
    %32 = vector.load %arg3[%c0_23, %c0_24] : memref<256x256xbf16, #tpu.memory_space<vmem>>, vector<256x256xbf16>
    %cst_25 = arith.constant dense<0.000000e+00> : vector<64x256xf32>
    %33 = tpu.matmul %31, %32, %cst_25 {dimension_numbers = #tpu.dot_dimension_numbers<[1], [0], [0], [1], [0, 0, 1, 1], [], []>} : vector<64x256xbf16>, vector<256x256xbf16>, vector<64x256xf32> -> vector<64x256xf32>
    %34 = vector.extract_strided_slice %33 {offsets = [0, 0], sizes = [32, 256], strides = [1, 1]} : vector<64x256xf32> to vector<32x256xf32>
    %35 = vector.extract_strided_slice %33 {offsets = [32, 0], sizes = [32, 256], strides = [1, 1]} : vector<64x256xf32> to vector<32x256xf32>
    %36 = arith.maximumf %34, %35 : vector<32x256xf32>
    %37 = arith.maximumf %24, %36 : vector<32x256xf32>
    %c6 = arith.constant 6 : index
    %c0_26 = arith.constant 0 : index
    %c0_27 = arith.constant 0 : index
    %38 = vector.load %arg1[%c6, %c0_26, %c0_27] : memref<16x32x128xbf16, #tpu.memory_space<vmem>>, vector<2x32x128xbf16>
    %39 = vector.shape_cast %38 : vector<2x32x128xbf16> to vector<64x128xbf16>
    %c0_28 = arith.constant 0 : index
    %c0_29 = arith.constant 0 : index
    %40 = vector.load %arg2[%c0_28, %c0_29] : memref<128x256xbf16, #tpu.memory_space<vmem>>, vector<128x256xbf16>
    %cst_30 = arith.constant dense<0.000000e+00> : vector<64x256xf32>
    %41 = tpu.matmul %39, %40, %cst_30 {dimension_numbers = #tpu.dot_dimension_numbers<[1], [0], [0], [1], [0, 0, 1, 1], [], []>} : vector<64x128xbf16>, vector<128x256xbf16>, vector<64x256xf32> -> vector<64x256xf32>
    %cst_31 = arith.constant 0.000000e+00 : f32
    %42 = vector.broadcast %cst_31 : f32 to vector<64x256xf32>
    %43 = arith.maximumf %41, %42 : vector<64x256xf32>
    %44 = arith.truncf %43 : vector<64x256xf32> to vector<64x256xbf16>
    %c0_32 = arith.constant 0 : index
    %c0_33 = arith.constant 0 : index
    %45 = vector.load %arg3[%c0_32, %c0_33] : memref<256x256xbf16, #tpu.memory_space<vmem>>, vector<256x256xbf16>
    %cst_34 = arith.constant dense<0.000000e+00> : vector<64x256xf32>
    %46 = tpu.matmul %44, %45, %cst_34 {dimension_numbers = #tpu.dot_dimension_numbers<[1], [0], [0], [1], [0, 0, 1, 1], [], []>} : vector<64x256xbf16>, vector<256x256xbf16>, vector<64x256xf32> -> vector<64x256xf32>
    %47 = vector.extract_strided_slice %46 {offsets = [0, 0], sizes = [32, 256], strides = [1, 1]} : vector<64x256xf32> to vector<32x256xf32>
    %48 = vector.extract_strided_slice %46 {offsets = [32, 0], sizes = [32, 256], strides = [1, 1]} : vector<64x256xf32> to vector<32x256xf32>
    %49 = arith.maximumf %47, %48 : vector<32x256xf32>
    %50 = arith.maximumf %37, %49 : vector<32x256xf32>
    %c8 = arith.constant 8 : index
    %c0_35 = arith.constant 0 : index
    %c0_36 = arith.constant 0 : index
    %51 = vector.load %arg1[%c8, %c0_35, %c0_36] : memref<16x32x128xbf16, #tpu.memory_space<vmem>>, vector<2x32x128xbf16>
    %52 = vector.shape_cast %51 : vector<2x32x128xbf16> to vector<64x128xbf16>
    %c0_37 = arith.constant 0 : index
    %c0_38 = arith.constant 0 : index
    %53 = vector.load %arg2[%c0_37, %c0_38] : memref<128x256xbf16, #tpu.memory_space<vmem>>, vector<128x256xbf16>
    %cst_39 = arith.constant dense<0.000000e+00> : vector<64x256xf32>
    %54 = tpu.matmul %52, %53, %cst_39 {dimension_numbers = #tpu.dot_dimension_numbers<[1], [0], [0], [1], [0, 0, 1, 1], [], []>} : vector<64x128xbf16>, vector<128x256xbf16>, vector<64x256xf32> -> vector<64x256xf32>
    %cst_40 = arith.constant 0.000000e+00 : f32
    %55 = vector.broadcast %cst_40 : f32 to vector<64x256xf32>
    %56 = arith.maximumf %54, %55 : vector<64x256xf32>
    %57 = arith.truncf %56 : vector<64x256xf32> to vector<64x256xbf16>
    %c0_41 = arith.constant 0 : index
    %c0_42 = arith.constant 0 : index
    %58 = vector.load %arg3[%c0_41, %c0_42] : memref<256x256xbf16, #tpu.memory_space<vmem>>, vector<256x256xbf16>
    %cst_43 = arith.constant dense<0.000000e+00> : vector<64x256xf32>
    %59 = tpu.matmul %57, %58, %cst_43 {dimension_numbers = #tpu.dot_dimension_numbers<[1], [0], [0], [1], [0, 0, 1, 1], [], []>} : vector<64x256xbf16>, vector<256x256xbf16>, vector<64x256xf32> -> vector<64x256xf32>
    %60 = vector.extract_strided_slice %59 {offsets = [0, 0], sizes = [32, 256], strides = [1, 1]} : vector<64x256xf32> to vector<32x256xf32>
    %61 = vector.extract_strided_slice %59 {offsets = [32, 0], sizes = [32, 256], strides = [1, 1]} : vector<64x256xf32> to vector<32x256xf32>
    %62 = arith.maximumf %60, %61 : vector<32x256xf32>
    %63 = arith.maximumf %50, %62 : vector<32x256xf32>
    %c10 = arith.constant 10 : index
    %c0_44 = arith.constant 0 : index
    %c0_45 = arith.constant 0 : index
    %64 = vector.load %arg1[%c10, %c0_44, %c0_45] : memref<16x32x128xbf16, #tpu.memory_space<vmem>>, vector<2x32x128xbf16>
    %65 = vector.shape_cast %64 : vector<2x32x128xbf16> to vector<64x128xbf16>
    %c0_46 = arith.constant 0 : index
    %c0_47 = arith.constant 0 : index
    %66 = vector.load %arg2[%c0_46, %c0_47] : memref<128x256xbf16, #tpu.memory_space<vmem>>, vector<128x256xbf16>
    %cst_48 = arith.constant dense<0.000000e+00> : vector<64x256xf32>
    %67 = tpu.matmul %65, %66, %cst_48 {dimension_numbers = #tpu.dot_dimension_numbers<[1], [0], [0], [1], [0, 0, 1, 1], [], []>} : vector<64x128xbf16>, vector<128x256xbf16>, vector<64x256xf32> -> vector<64x256xf32>
    %cst_49 = arith.constant 0.000000e+00 : f32
    %68 = vector.broadcast %cst_49 : f32 to vector<64x256xf32>
    %69 = arith.maximumf %67, %68 : vector<64x256xf32>
    %70 = arith.truncf %69 : vector<64x256xf32> to vector<64x256xbf16>
    %c0_50 = arith.constant 0 : index
    %c0_51 = arith.constant 0 : index
    %71 = vector.load %arg3[%c0_50, %c0_51] : memref<256x256xbf16, #tpu.memory_space<vmem>>, vector<256x256xbf16>
    %cst_52 = arith.constant dense<0.000000e+00> : vector<64x256xf32>
    %72 = tpu.matmul %70, %71, %cst_52 {dimension_numbers = #tpu.dot_dimension_numbers<[1], [0], [0], [1], [0, 0, 1, 1], [], []>} : vector<64x256xbf16>, vector<256x256xbf16>, vector<64x256xf32> -> vector<64x256xf32>
    %73 = vector.extract_strided_slice %72 {offsets = [0, 0], sizes = [32, 256], strides = [1, 1]} : vector<64x256xf32> to vector<32x256xf32>
    %74 = vector.extract_strided_slice %72 {offsets = [32, 0], sizes = [32, 256], strides = [1, 1]} : vector<64x256xf32> to vector<32x256xf32>
    %75 = arith.maximumf %73, %74 : vector<32x256xf32>
    %76 = arith.maximumf %63, %75 : vector<32x256xf32>
    %c12 = arith.constant 12 : index
    %c0_53 = arith.constant 0 : index
    %c0_54 = arith.constant 0 : index
    %77 = vector.load %arg1[%c12, %c0_53, %c0_54] : memref<16x32x128xbf16, #tpu.memory_space<vmem>>, vector<2x32x128xbf16>
    %78 = vector.shape_cast %77 : vector<2x32x128xbf16> to vector<64x128xbf16>
    %c0_55 = arith.constant 0 : index
    %c0_56 = arith.constant 0 : index
    %79 = vector.load %arg2[%c0_55, %c0_56] : memref<128x256xbf16, #tpu.memory_space<vmem>>, vector<128x256xbf16>
    %cst_57 = arith.constant dense<0.000000e+00> : vector<64x256xf32>
    %80 = tpu.matmul %78, %79, %cst_57 {dimension_numbers = #tpu.dot_dimension_numbers<[1], [0], [0], [1], [0, 0, 1, 1], [], []>} : vector<64x128xbf16>, vector<128x256xbf16>, vector<64x256xf32> -> vector<64x256xf32>
    %cst_58 = arith.constant 0.000000e+00 : f32
    %81 = vector.broadcast %cst_58 : f32 to vector<64x256xf32>
    %82 = arith.maximumf %80, %81 : vector<64x256xf32>
    %83 = arith.truncf %82 : vector<64x256xf32> to vector<64x256xbf16>
    %c0_59 = arith.constant 0 : index
    %c0_60 = arith.constant 0 : index
    %84 = vector.load %arg3[%c0_59, %c0_60] : memref<256x256xbf16, #tpu.memory_space<vmem>>, vector<256x256xbf16>
    %cst_61 = arith.constant dense<0.000000e+00> : vector<64x256xf32>
    %85 = tpu.matmul %83, %84, %cst_61 {dimension_numbers = #tpu.dot_dimension_numbers<[1], [0], [0], [1], [0, 0, 1, 1], [], []>} : vector<64x256xbf16>, vector<256x256xbf16>, vector<64x256xf32> -> vector<64x256xf32>
    %86 = vector.extract_strided_slice %85 {offsets = [0, 0], sizes = [32, 256], strides = [1, 1]} : vector<64x256xf32> to vector<32x256xf32>
    %87 = vector.extract_strided_slice %85 {offsets = [32, 0], sizes = [32, 256], strides = [1, 1]} : vector<64x256xf32> to vector<32x256xf32>
    %88 = arith.maximumf %86, %87 : vector<32x256xf32>
    %89 = arith.maximumf %76, %88 : vector<32x256xf32>
    %c14 = arith.constant 14 : index
    %c0_62 = arith.constant 0 : index
    %c0_63 = arith.constant 0 : index
    %90 = vector.load %arg1[%c14, %c0_62, %c0_63] : memref<16x32x128xbf16, #tpu.memory_space<vmem>>, vector<2x32x128xbf16>
    %91 = vector.shape_cast %90 : vector<2x32x128xbf16> to vector<64x128xbf16>
    %c0_64 = arith.constant 0 : index
    %c0_65 = arith.constant 0 : index
    %92 = vector.load %arg2[%c0_64, %c0_65] : memref<128x256xbf16, #tpu.memory_space<vmem>>, vector<128x256xbf16>
    %cst_66 = arith.constant dense<0.000000e+00> : vector<64x256xf32>
    %93 = tpu.matmul %91, %92, %cst_66 {dimension_numbers = #tpu.dot_dimension_numbers<[1], [0], [0], [1], [0, 0, 1, 1], [], []>} : vector<64x128xbf16>, vector<128x256xbf16>, vector<64x256xf32> -> vector<64x256xf32>
    %cst_67 = arith.constant 0.000000e+00 : f32
    %94 = vector.broadcast %cst_67 : f32 to vector<64x256xf32>
    %95 = arith.maximumf %93, %94 : vector<64x256xf32>
    %96 = arith.truncf %95 : vector<64x256xf32> to vector<64x256xbf16>
    %c0_68 = arith.constant 0 : index
    %c0_69 = arith.constant 0 : index
    %97 = vector.load %arg3[%c0_68, %c0_69] : memref<256x256xbf16, #tpu.memory_space<vmem>>, vector<256x256xbf16>
    %cst_70 = arith.constant dense<0.000000e+00> : vector<64x256xf32>
    %98 = tpu.matmul %96, %97, %cst_70 {dimension_numbers = #tpu.dot_dimension_numbers<[1], [0], [0], [1], [0, 0, 1, 1], [], []>} : vector<64x256xbf16>, vector<256x256xbf16>, vector<64x256xf32> -> vector<64x256xf32>
    %99 = vector.extract_strided_slice %98 {offsets = [0, 0], sizes = [32, 256], strides = [1, 1]} : vector<64x256xf32> to vector<32x256xf32>
    %100 = vector.extract_strided_slice %98 {offsets = [32, 0], sizes = [32, 256], strides = [1, 1]} : vector<64x256xf32> to vector<32x256xf32>
    %101 = arith.maximumf %99, %100 : vector<32x256xf32>
    %102 = arith.maximumf %89, %101 : vector<32x256xf32>
    %c0_71 = arith.constant 0 : index
    %c0_72 = arith.constant 0 : index
    %103 = vector.load %arg4[%c0_71, %c0_72] : memref<8x256xf32, #tpu.memory_space<vmem>>, vector<1x256xf32>
    %104 = vector.broadcast %103 : vector<1x256xf32> to vector<32x256xf32>
    %105 = arith.addf %102, %104 : vector<32x256xf32>
    %cst_73 = arith.constant 0.000000e+00 : f32
    %106 = vector.broadcast %cst_73 : f32 to vector<32x256xf32>
    %107 = arith.maximumf %105, %106 : vector<32x256xf32>
    %c0_74 = arith.constant 0 : index
    %c0_75 = arith.constant 0 : index
    %108 = vector.load %arg5[%c0_74, %c0_75] : memref<32x256xf32, #tpu.memory_space<vmem>>, vector<32x256xf32>
    tpu.vector_store %arg5[%c0_74, %c0_75], %107 {strides = array<i32>} : memref<32x256xf32, #tpu.memory_space<vmem>>, vector<32x256xf32>,
    return
  }
  func.func @transform_0(%arg0: i32) -> (i32, i32, i32) {
    %c0_i32 = arith.constant 0 : i32
    %c0_i32_0 = arith.constant 0 : i32
    %c0_i32_1 = arith.constant 0 : i32
    return %c0_i32, %arg0, %c0_i32_0 : i32, i32, i32
  }
  func.func @transform_1(%arg0: i32) -> (i32, i32) {
    %c0_i32 = arith.constant 0 : i32
    %c0_i32_0 = arith.constant 0 : i32
    %c0_i32_1 = arith.constant 0 : i32
    return %c0_i32, %c0_i32_0 : i32, i32
  }
  func.func @transform_2(%arg0: i32) -> (i32, i32) {
    %c0_i32 = arith.constant 0 : i32
    %c0_i32_0 = arith.constant 0 : i32
    %c0_i32_1 = arith.constant 0 : i32
    return %c0_i32, %c0_i32_0 : i32, i32
  }
  func.func @transform_3(%arg0: i32) -> (i32, i32) {
    %c0_i32 = arith.constant 0 : i32
    %c0_i32_0 = arith.constant 0 : i32
    %c0_i32_1 = arith.constant 0 : i32
    return %c0_i32, %c0_i32_0 : i32, i32
  }
  func.func @transform_4(%arg0: i32) -> (i32, i32) {
    %c0_i32 = arith.constant 0 : i32
    %c0_i32_0 = arith.constant 0 : i32
    return %arg0, %c0_i32 : i32, i32
  }
}

</mosaic_0001>

<llo_original>
// kernel: cloudcrop_forward.1
$region0: #{cloudcrop_forward.1}
  #allocation0 [shape = 'u32[]', space=smem, size = 0x4, offset = 0x4, fixed_abs, tag = 'smem constant byte address 0x4 - core index']
  #allocation1 [shape = 'u32[144,128]{1,0:T(1,128)}', space=vmem, size = 0x12000, scoped, tag = 'internal scratch']
  %s0 = inlined_call_operand.vmem [shape: bf16[16,32,128], index: 0, kind: input, shape index: {}]
  %s1 = inlined_call_operand.vmem [shape: bf16[128,256], index: 1, kind: input, shape index: {}]
  %s2 = inlined_call_operand.vmem [shape: bf16[256,256], index: 2, kind: input, shape index: {}]
  %s3 = inlined_call_operand.vmem [shape: f32[8,256], index: 3, kind: input, shape index: {}]
  %s4 = inlined_call_operand.hbm [shape: f32[32,256], index: 4, kind: output, shape index: {}]
  %s5 = sld [smem:[#allocation0]]
  $region26: #{cloudcrop_forward.1} parent=0
    _
  %s7 = ssub.s32 1, %s5
  %s8 = scalar_select 0, %s7, %s5
  $region1: #{cloudcrop_forward.1} parent=0
    #allocation2 [shape = 'u8[32768]{0}', space=vmem, size = 0x8000, scoped, tag = 'output window, operand 0, single buffered']
    #allocation3 [shape = 's32[1]{0}', space=sflag, size = 0x4, scoped, tag = 'scoped memory for cloudcrop_forward.1']
    %9 = vsyncpa [#allocation3], 0
    // Predicated region
    $region2: #{cloudcrop_forward.1} parent=1 // pred_check
      _
    $region3: #{cloudcrop_forward.1} parent=1 // pred_check_branch
      %11 = sbr.rel (0) target = $region5
    $region4: #{cloudcrop_forward.1} parent=1 // pred_region
      _
    $region5: #{cloudcrop_forward.1} parent=1 // pred_fallthru
      _
    // Predicated region
    $region6: #{cloudcrop_forward.1} parent=1 // pred_check
      _
    $region7: #{cloudcrop_forward.1} parent=1 // pred_check_branch
      %13 = sbr.rel (0) target = $region9
    $region8: #{cloudcrop_forward.1} parent=1 // pred_region
      _
    $region9: #{cloudcrop_forward.1} parent=1 // pred_fallthru
      _
    // Predicated region
    $region10: #{cloudcrop_forward.1} parent=1 // pred_check
      _
    $region11: #{cloudcrop_forward.1} parent=1 // pred_check_branch
      %15 = sbr.rel (0) target = $region13
    $region12: #{cloudcrop_forward.1} parent=1 // pred_region
      _
    $region13: #{cloudcrop_forward.1} parent=1 // pred_fallthru
      _
    // Predicated region
    $region14: #{cloudcrop_forward.1} parent=1 // pred_check
      _
    $region15: #{cloudcrop_forward.1} parent=1 // pred_check_branch
      %17 = sbr.rel (0) target = $region17
    $region16: #{cloudcrop_forward.1} parent=1 // pred_region
      _
    $region17: #{cloudcrop_forward.1} parent=1 // pred_fallthru
      _
    %v19 = vld [vmem:[%s0] sm:$0xf]
    %v20 = vld [vmem:[%s0 + $0x4] sm:$0xf]
    %v21 = vld [vmem:[%s0 + $0x8] sm:$0xf]
    %v22 = vld [vmem:[%s0 + $0xc] sm:$0xf]
    %v23 = vld [vmem:[%s0 + $0x10] sm:$0xf]
    %v24 = vld [vmem:[%s0 + $0x14] sm:$0xf]
    %v25 = vld [vmem:[%s0 + $0x18] sm:$0xf]
    %v26 = vld [vmem:[%s0 + $0x1c] sm:$0xf]
    %v27 = vld [vmem:[%s1] sm:$0xff]
    %v28 = vld [vmem:[%s1 + $0x8] sm:$0xff]
    %v29 = vld [vmem:[%s1 + $0x10] sm:$0xff]
    %v30 = vld [vmem:[%s1 + $0x18] sm:$0xff]
    %v31 = vld [vmem:[%s1 + $0x20] sm:$0xff]
    %v32 = vld [vmem:[%s1 + $0x28] sm:$0xff]
    %v33 = vld [vmem:[%s1 + $0x30] sm:$0xff]
    %v34 = vld [vmem:[%s1 + $0x38] sm:$0xff]
    %v35 = vld [vmem:[%s1 + $0x40] sm:$0xff]
    %v36 = vld [vmem:[%s1 + $0x48] sm:$0xff]
    %v37 = vld [vmem:[%s1 + $0x50] sm:$0xff]
    %v38 = vld [vmem:[%s1 + $0x58] sm:$0xff]
    %v39 = vld [vmem:[%s1 + $0x60] sm:$0xff]
    %v40 = vld [vmem:[%s1 + $0x68] sm:$0xff]
    %v41 = vld [vmem:[%s1 + $0x70] sm:$0xff]
    %v42 = vld [vmem:[%s1 + $0x78] sm:$0xff]
    %v51 = vunpack.c.l.b16 %v19
    %v52 = vunpack.c.l.b16 %v20
    %v53 = vunpack.c.l.b16 %v21
    %v54 = vunpack.c.l.b16 %v22
    %v55 = vunpack.c.l.b16 %v23
    %v56 = vunpack.c.l.b16 %v24
    %v57 = vunpack.c.l.b16 %v25
    %v58 = vunpack.c.l.b16 %v26
    %v59 = vpack.c.b16 %v52, %v51
    %v60 = vpack.c.b16 %v54, %v53
    %v61 = vpack.c.b16 %v56, %v55
    %v62 = vpack.c.b16 %v58, %v57
    %v83 = vunpack.c.l.b16 %v27
    %v84 = vunpack.c.h.b16 %v27
    %v85 = vunpack.c.l.b16 %v28
    %v86 = vunpack.c.h.b16 %v28
    %v87 = vunpack.c.l.b16 %v29
    %v88 = vunpack.c.h.b16 %v29
    %v89 = vunpack.c.l.b16 %v30
    %v90 = vunpack.c.h.b16 %v30
    %v91 = vunpack.c.l.b16 %v31
    %v92 = vunpack.c.h.b16 %v31
    %v93 = vunpack.c.l.b16 %v32
    %v94 = vunpack.c.h.b16 %v32
    %v95 = vunpack.c.l.b16 %v33
    %v96 = vunpack.c.h.b16 %v33
    %v97 = vunpack.c.l.b16 %v34
    %v98 = vunpack.c.h.b16 %v34
    %v99 = vunpack.c.l.b16 %v35
    %v100 = vunpack.c.h.b16 %v35
    %v101 = vunpack.c.l.b16 %v36
    %v102 = vunpack.c.h.b16 %v36
    %v103 = vunpack.c.l.b16 %v37
    %v104 = vunpack.c.h.b16 %v37
    %v105 = vunpack.c.l.b16 %v38
    %v106 = vunpack.c.h.b16 %v38
    %v107 = vunpack.c.l.b16 %v39
    %v108 = vunpack.c.h.b16 %v39
    %v109 = vunpack.c.l.b16 %v40
    %v110 = vunpack.c.h.b16 %v40
    %v111 = vunpack.c.l.b16 %v41
    %v112 = vunpack.c.h.b16 %v41
    %v113 = vunpack.c.l.b16 %v42
    %v114 = vunpack.c.h.b16 %v42
    %v115 = vpack.c.b16 %v85, %v83
    %v116 = vpack.c.b16 %v86, %v84
    %v117 = vpack.c.b16 %v89, %v87
    %v118 = vpack.c.b16 %v90, %v88
    %v119 = vpack.c.b16 %v93, %v91
    %v120 = vpack.c.b16 %v94, %v92
    %v121 = vpack.c.b16 %v97, %v95
    %v122 = vpack.c.b16 %v98, %v96
    %v123 = vpack.c.b16 %v101, %v99
    %v124 = vpack.c.b16 %v102, %v100
    %v125 = vpack.c.b16 %v105, %v103
    %v126 = vpack.c.b16 %v106, %v104
    %v127 = vpack.c.b16 %v109, %v107
    %v128 = vpack.c.b16 %v110, %v108
    %v129 = vpack.c.b16 %v113, %v111
    %v130 = vpack.c.b16 %v114, %v112
    %147 = vmatprep.subr.bf16.mxu0 %v116
    %148 = vmatpush1.bf16.msra.mxu0 %v115
    %149 = vmatprep.subr.bf16.mxu0 %v118
    %150 = vmatpush1.bf16.msra.mxu0 %v117
    %151 = vmatprep.subr.bf16.mxu0 %v120
    %152 = vmatpush1.bf16.msra.mxu0 %v119
    %153 = vmatprep.subr.bf16.mxu0 %v122
    %154 = vmatpush1.bf16.msra.mxu0 %v121
    %155 = vmatprep.subr.bf16.mxu0 %v124
    %156 = vmatpush1.bf16.msra.mxu0 %v123
    %157 = vmatprep.subr.bf16.mxu0 %v126
    %158 = vmatpush1.bf16.msra.mxu0 %v125
    %159 = vmatprep.subr.bf16.mxu0 %v128
    %160 = vmatpush1.bf16.msra.mxu0 %v127
    %161 = vmatprep.subr.bf16.mxu0 %v130
    %162 = vmatpush1.bf16.msra.mxu0 %v129
    %163 = vmatprep.subr.bf16.mxu0 0
    %164 = vmatpush1.bf16.msra.mxu0 0
    %165 = vmatprep.subr.bf16.mxu0 0
    %166 = vmatpush1.bf16.msra.mxu0 0
    %167 = vmatprep.subr.bf16.mxu0 0
    %168 = vmatpush1.bf16.msra.mxu0 0
    %169 = vmatprep.subr.bf16.mxu0 0
    %170 = vmatpush1.bf16.msra.mxu0 0
    %171 = vmatprep.subr.bf16.mxu0 0
    %172 = vmatpush1.bf16.msra.mxu0 0
    %173 = vmatprep.subr.bf16.mxu0 0
    %174 = vmatpush1.bf16.msra.mxu0 0
    %175 = vmatprep.subr.bf16.mxu0 0
    %176 = vmatpush1.bf16.msra.mxu0 0
    %177 = vmatprep.subr.bf16.mxu0 0
    %178 = vmatpush1.bf16.msra.mxu0 0
    %179 = vmatprep.mubr.bf16.mxu0 0
    %180 = vmatmul.mubr.bf16.gmra.mrb[0].mxu0 %v59
    %v181 = vpop.f32.mrb[0].mxu0
    %v182 = vadd.f32 0.0, %v181
    %v183 = vpop.f32.mrb[0].mxu0
    %v184 = vadd.f32 0.0, %v183
    %v185 = vpop.f32.mrb[0].mxu0
    %v186 = vadd.f32 0.0, %v185
    %v187 = vpop.f32.mrb[0].mxu0
    %v188 = vadd.f32 0.0, %v187
    %189 = vmatprep.mubr.bf16.mxu0 0
    %190 = vmatmul.mubr.bf16.gmra.mrb[0].mxu0 %v60
    %v191 = vpop.f32.mrb[0].mxu0
    %v192 = vadd.f32 0.0, %v191
    %v193 = vpop.f32.mrb[0].mxu0
    %v194 = vadd.f32 0.0, %v193
    %v195 = vpop.f32.mrb[0].mxu0
    %v196 = vadd.f32 0.0, %v195
    %v197 = vpop.f32.mrb[0].mxu0
    %v198 = vadd.f32 0.0, %v197
    %199 = vmatprep.mubr.bf16.mxu0 0
    %200 = vmatmul.mubr.bf16.gmra.mrb[0].mxu0 %v61
    %v201 = vpop.f32.mrb[0].mxu0
    %v202 = vadd.f32 0.0, %v201
    %v203 = vpop.f32.mrb[0].mxu0
    %v204 = vadd.f32 0.0, %v203
    %v205 = vpop.f32.mrb[0].mxu0
    %v206 = vadd.f32 0.0, %v205
    %v207 = vpop.f32.mrb[0].mxu0
    %v208 = vadd.f32 0.0, %v207
    %209 = vmatprep.mubr.bf16.mxu0 0
    %210 = vmatmul.mubr.bf16.gmra.mrb[0].mxu0 %v62
    %v211 = vpop.f32.mrb[0].mxu0
    %v212 = vadd.f32 0.0, %v211
    %v213 = vpop.f32.mrb[0].mxu0
    %v214 = vadd.f32 0.0, %v213
    %v215 = vpop.f32.mrb[0].mxu0
    %v216 = vadd.f32 0.0, %v215
    %v217 = vpop.f32.mrb[0].mxu0
    %v218 = vadd.f32 0.0, %v217
    %219 = vdwg.mxu0
    %v220 = vmax.f32 %v182, 0.0
    %v221 = vmax.f32 %v184, 0.0
    %v222 = vmax.f32 %v186, 0.0
    %v223 = vmax.f32 %v188, 0.0
    %v224 = vmax.f32 %v192, 0.0
    %v225 = vmax.f32 %v194, 0.0
    %v226 = vmax.f32 %v196, 0.0
    %v227 = vmax.f32 %v198, 0.0
    %v228 = vmax.f32 %v202, 0.0
    %v229 = vmax.f32 %v204, 0.0
    %v230 = vmax.f32 %v206, 0.0
    %v231 = vmax.f32 %v208, 0.0
    %v232 = vmax.f32 %v212, 0.0
    %v233 = vmax.f32 %v214, 0.0
    %v234 = vmax.f32 %v216, 0.0
    %v235 = vmax.f32 %v218, 0.0
    %v236 = vpack.c.bf16 %v222, %v220
    %v237 = vpack.c.bf16 %v223, %v221
    %v238 = vpack.c.bf16 %v226, %v224
    %v239 = vpack.c.bf16 %v227, %v225
    %v240 = vpack.c.bf16 %v230, %v228
    %v241 = vpack.c.bf16 %v231, %v229
    %v242 = vpack.c.bf16 %v234, %v232
    %v243 = vpack.c.bf16 %v235, %v233
    %v244 = vld [vmem:[%s2] sm:$0xff]
    %v245 = vld [vmem:[%s2 + $0x8] sm:$0xff]
    %v246 = vld [vmem:[%s2 + $0x10] sm:$0xff]
    %v247 = vld [vmem:[%s2 + $0x18] sm:$0xff]
    %v248 = vld [vmem:[%s2 + $0x20] sm:$0xff]
    %v249 = vld [vmem:[%s2 + $0x28] sm:$0xff]
    %v250 = vld [vmem:[%s2 + $0x30] sm:$0xff]
    %v251 = vld [vmem:[%s2 + $0x38] sm:$0xff]
    %v252 = vld [vmem:[%s2 + $0x40] sm:$0xff]
    %v253 = vld [vmem:[%s2 + $0x48] sm:$0xff]
    %v254 = vld [vmem:[%s2 + $0x50] sm:$0xff]
    %v255 = vld [vmem:[%s2 + $0x58] sm:$0xff]
    %v256 = vld [vmem:[%s2 + $0x60] sm:$0xff]
    %v257 = vld [vmem:[%s2 + $0x68] sm:$0xff]
    %v258 = vld [vmem:[%s2 + $0x70] sm:$0xff]
    %v259 = vld [vmem:[%s2 + $0x78] sm:$0xff]
    %v260 = vld [vmem:[%s2 + $0x80] sm:$0xff]
    %v261 = vld [vmem:[%s2 + $0x88] sm:$0xff]
    %v262 = vld [vmem:[%s2 + $0x90] sm:$0xff]
    %v263 = vld [vmem:[%s2 + $0x98] sm:$0xff]
    %v264 = vld [vmem:[%s2 + $0xa0] sm:$0xff]
    %v265 = vld [vmem:[%s2 + $0xa8] sm:$0xff]
    %v266 = vld [vmem:[%s2 + $0xb0] sm:$0xff]
    %v267 = vld [vmem:[%s2 + $0xb8] sm:$0xff]
    %v268 = vld [vmem:[%s2 + $0xc0] sm:$0xff]
    %v269 = vld [vmem:[%s2 + $0xc8] sm:$0xff]
    %v270 = vld [vmem:[%s2 + $0xd0] sm:$0xff]
    %v271 = vld [vmem:[%s2 + $0xd8] sm:$0xff]
    %v272 = vld [vmem:[%s2 + $0xe0] sm:$0xff]
    %v273 = vld [vmem:[%s2 + $0xe8] sm:$0xff]
    %v274 = vld [vmem:[%s2 + $0xf0] sm:$0xff]
    %v275 = vld [vmem:[%s2 + $0xf8] sm:$0xff]
    %v308 = vunpack.c.l.b16 %v244
    %v309 = vunpack.c.h.b16 %v244
    %v310 = vunpack.c.l.b16 %v245
    %v311 = vunpack.c.h.b16 %v245
    %v312 = vunpack.c.l.b16 %v246
    %v313 = vunpack.c.h.b16 %v246
    %v314 = vunpack.c.l.b16 %v247
    %v315 = vunpack.c.h.b16 %v247
    %v316 = vunpack.c.l.b16 %v248
    %v317 = vunpack.c.h.b16 %v248
    %v318 = vunpack.c.l.b16 %v249
    %v319 = vunpack.c.h.b16 %v249
    %v320 = vunpack.c.l.b16 %v250
    %v321 = vunpack.c.h.b16 %v250
    %v322 = vunpack.c.l.b16 %v251
    %v323 = vunpack.c.h.b16 %v251
    %v324 = vunpack.c.l.b16 %v252
    %v325 = vunpack.c.h.b16 %v252
    %v326 = vunpack.c.l.b16 %v253
    %v327 = vunpack.c.h.b16 %v253
    %v328 = vunpack.c.l.b16 %v254
    %v329 = vunpack.c.h.b16 %v254
    %v330 = vunpack.c.l.b16 %v255
    %v331 = vunpack.c.h.b16 %v255
    %v332 = vunpack.c.l.b16 %v256
    %v333 = vunpack.c.h.b16 %v256
    %v334 = vunpack.c.l.b16 %v257
    %v335 = vunpack.c.h.b16 %v257
    %v336 = vunpack.c.l.b16 %v258
    %v337 = vunpack.c.h.b16 %v258
    %v338 = vunpack.c.l.b16 %v259
    %v339 = vunpack.c.h.b16 %v259
    %v340 = vunpack.c.l.b16 %v260
    %v341 = vunpack.c.h.b16 %v260
    %v342 = vunpack.c.l.b16 %v261
    %v343 = vunpack.c.h.b16 %v261
    %v344 = vunpack.c.l.b16 %v262
    %v345 = vunpack.c.h.b16 %v262
    %v346 = vunpack.c.l.b16 %v263
    %v347 = vunpack.c.h.b16 %v263
    %v348 = vunpack.c.l.b16 %v264
    %v349 = vunpack.c.h.b16 %v264
    %v350 = vunpack.c.l.b16 %v265
    %v351 = vunpack.c.h.b16 %v265
    %v352 = vunpack.c.l.b16 %v266
    %v353 = vunpack.c.h.b16 %v266
    %v354 = vunpack.c.l.b16 %v267
    %v355 = vunpack.c.h.b16 %v267
    %v356 = vunpack.c.l.b16 %v268
    %v357 = vunpack.c.h.b16 %v268
    %v358 = vunpack.c.l.b16 %v269
    %v359 = vunpack.c.h.b16 %v269
    %v360 = vunpack.c.l.b16 %v270
    %v361 = vunpack.c.h.b16 %v270
    %v362 = vunpack.c.l.b16 %v271
    %v363 = vunpack.c.h.b16 %v271
    %v364 = vunpack.c.l.b16 %v272
    %v365 = vunpack.c.h.b16 %v272
    %v366 = vunpack.c.l.b16 %v273
    %v367 = vunpack.c.h.b16 %v273
    %v368 = vunpack.c.l.b16 %v274
    %v369 = vunpack.c.h.b16 %v274
    %v370 = vunpack.c.l.b16 %v275
    %v371 = vunpack.c.h.b16 %v275
    %v372 = vpack.c.b16 %v310, %v308
    %v373 = vpack.c.b16 %v311, %v309
    %v374 = vpack.c.b16 %v314, %v312
    %v375 = vpack.c.b16 %v315, %v313
    %v376 = vpack.c.b16 %v318, %v316
    %v377 = vpack.c.b16 %v319, %v317
    %v378 = vpack.c.b16 %v322, %v320
    %v379 = vpack.c.b16 %v323, %v321
    %v380 = vpack.c.b16 %v326, %v324
    %v381 = vpack.c.b16 %v327, %v325
    %v382 = vpack.c.b16 %v330, %v328
    %v383 = vpack.c.b16 %v331, %v329
    %v384 = vpack.c.b16 %v334, %v332
    %v385 = vpack.c.b16 %v335, %v333
    %v386 = vpack.c.b16 %v338, %v336
    %v387 = vpack.c.b16 %v339, %v337
    %v388 = vpack.c.b16 %v342, %v340
    %v389 = vpack.c.b16 %v343, %v341
    %v390 = vpack.c.b16 %v346, %v344
    %v391 = vpack.c.b16 %v347, %v345
    %v392 = vpack.c.b16 %v350, %v348
    %v393 = vpack.c.b16 %v351, %v349
    %v394 = vpack.c.b16 %v354, %v352
    %v395 = vpack.c.b16 %v355, %v353
    %v396 = vpack.c.b16 %v358, %v356
    %v397 = vpack.c.b16 %v359, %v357
    %v398 = vpack.c.b16 %v362, %v360
    %v399 = vpack.c.b16 %v363, %v361
    %v400 = vpack.c.b16 %v366, %v364
    %v401 = vpack.c.b16 %v367, %v365
    %v402 = vpack.c.b16 %v370, %v368
    %v403 = vpack.c.b16 %v371, %v369
    %436 = vmatprep.subr.bf16.mxu0 %v373
    %437 = vmatpush1.bf16.msra.mxu0 %v372
    %438 = vmatprep.subr.bf16.mxu0 %v375
    %439 = vmatpush1.bf16.msra.mxu0 %v374
    %440 = vmatprep.subr.bf16.mxu0 %v377
    %441 = vmatpush1.bf16.msra.mxu0 %v376
    %442 = vmatprep.subr.bf16.mxu0 %v379
    %443 = vmatpush1.bf16.msra.mxu0 %v378
    %444 = vmatprep.subr.bf16.mxu0 %v381
    %445 = vmatpush1.bf16.msra.mxu0 %v380
    %446 = vmatprep.subr.bf16.mxu0 %v383
    %447 = vmatpush1.bf16.msra.mxu0 %v382
    %448 = vmatprep.subr.bf16.mxu0 %v385
    %449 = vmatpush1.bf16.msra.mxu0 %v384
    %450 = vmatprep.subr.bf16.mxu0 %v387
    %451 = vmatpush1.bf16.msra.mxu0 %v386
    %452 = vmatprep.subr.bf16.mxu0 %v389
    %453 = vmatpush1.bf16.msra.mxu0 %v388
    %454 = vmatprep.subr.bf16.mxu0 %v391
    %455 = vmatpush1.bf16.msra.mxu0 %v390
    %456 = vmatprep.subr.bf16.mxu0 %v393
    %457 = vmatpush1.bf16.msra.mxu0 %v392
    %458 = vmatprep.subr.bf16.mxu0 %v395
    %459 = vmatpush1.bf16.msra.mxu0 %v394
    %460 = vmatprep.subr.bf16.mxu0 %v397
    %461 = vmatpush1.bf16.msra.mxu0 %v396
    %462 = vmatprep.subr.bf16.mxu0 %v399
    %463 = vmatpush1.bf16.msra.mxu0 %v398
    %464 = vmatprep.subr.bf16.mxu0 %v401
    %465 = vmatpush1.bf16.msra.mxu0 %v400
    %466 = vmatprep.subr.bf16.mxu0 %v403
    %467 = vmatpush1.bf16.msra.mxu0 %v402
    %468 = vmatprep.mubr.bf16.mxu0 %v237
    %469 = vmatmul.mubr.bf16.gmra.mrb[0].mxu0 %v236
    %v470 = vpop.f32.mrb[0].mxu0
    %v471 = vadd.f32 0.0, %v470
    %v472 = vpop.f32.mrb[0].mxu0
    %v473 = vadd.f32 0.0, %v472
    %v474 = vpop.f32.mrb[0].mxu0
    %v475 = vadd.f32 0.0, %v474
    %v476 = vpop.f32.mrb[0].mxu0
    %v477 = vadd.f32 0.0, %v476
    %478 = vmatprep.mubr.bf16.mxu0 %v239
    %479 = vmatmul.mubr.bf16.gmra.mrb[0].mxu0 %v238
    %v480 = vpop.f32.mrb[0].mxu0
    %v481 = vadd.f32 0.0, %v480
    %v482 = vpop.f32.mrb[0].mxu0
    %v483 = vadd.f32 0.0, %v482
    %v484 = vpop.f32.mrb[0].mxu0
    %v485 = vadd.f32 0.0, %v484
    %v486 = vpop.f32.mrb[0].mxu0
    %v487 = vadd.f32 0.0, %v486
    %488 = vmatprep.mubr.bf16.mxu0 %v241
    %489 = vmatmul.mubr.bf16.gmra.mrb[0].mxu0 %v240
    %v490 = vpop.f32.mrb[0].mxu0
    %v491 = vadd.f32 0.0, %v490
    %v492 = vpop.f32.mrb[0].mxu0
    %v493 = vadd.f32 0.0, %v492
    %v494 = vpop.f32.mrb[0].mxu0
    %v495 = vadd.f32 0.0, %v494
    %v496 = vpop.f32.mrb[0].mxu0
    %v497 = vadd.f32 0.0, %v496
    %498 = vmatprep.mubr.bf16.mxu0 %v243
    %499 = vmatmul.mubr.bf16.gmra.mrb[0].mxu0 %v242
    %v500 = vpop.f32.mrb[0].mxu0
    %v501 = vadd.f32 0.0, %v500
    %v502 = vpop.f32.mrb[0].mxu0
    %v503 = vadd.f32 0.0, %v502
    %v504 = vpop.f32.mrb[0].mxu0
    %v505 = vadd.f32 0.0, %v504
    %v506 = vpop.f32.mrb[0].mxu0
    %v507 = vadd.f32 0.0, %v506
    %508 = vdwg.mxu0
    %v509 = vmax.f32 %v471, %v491
    %v510 = vmax.f32 %v473, %v493
    %v511 = vmax.f32 %v475, %v495
    %v512 = vmax.f32 %v477, %v497
    %v513 = vmax.f32 %v481, %v501
    %v514 = vmax.f32 %v483, %v503
    %v515 = vmax.f32 %v485, %v505
    %v516 = vmax.f32 %v487, %v507
    %s517 = scalar_lea.vmem %s0, 32
    %v518 = vld [vmem:[%s517] sm:$0xf]
    %v519 = vld [vmem:[%s517 + $0x4] sm:$0xf]
    %v520 = vld [vmem:[%s517 + $0x8] sm:$0xf]
    %v521 = vld [vmem:[%s517 + $0xc] sm:$0xf]
    %v522 = vld [vmem:[%s517 + $0x10] sm:$0xf]
    %v523 = vld [vmem:[%s517 + $0x14] sm:$0xf]
    %v524 = vld [vmem:[%s517 + $0x18] sm:$0xf]
    %v525 = vld [vmem:[%s517 + $0x1c] sm:$0xf]
    %v534 = vunpack.c.l.b16 %v518
    %v535 = vunpack.c.l.b16 %v519
    %v536 = vunpack.c.l.b16 %v520
    %v537 = vunpack.c.l.b16 %v521
    %v538 = vunpack.c.l.b16 %v522
    %v539 = vunpack.c.l.b16 %v523
    %v540 = vunpack.c.l.b16 %v524
    %v541 = vunpack.c.l.b16 %v525
    %v542 = vpack.c.b16 %v535, %v534
    %v543 = vpack.c.b16 %v537, %v536
    %v544 = vpack.c.b16 %v539, %v538
    %v545 = vpack.c.b16 %v541, %v540
    %550 = vmatprep.subr.bf16.mxu0 %v116
    %551 = vmatpush1.bf16.msra.mxu0 %v115
    %552 = vmatprep.subr.bf16.mxu0 %v118
    %553 = vmatpush1.bf16.msra.mxu0 %v117
    %554 = vmatprep.subr.bf16.mxu0 %v120
    %555 = vmatpush1.bf16.msra.mxu0 %v119
    %556 = vmatprep.subr.bf16.mxu0 %v122
    %557 = vmatpush1.bf16.msra.mxu0 %v121
    %558 = vmatprep.subr.bf16.mxu0 %v124
    %559 = vmatpush1.bf16.msra.mxu0 %v123
    %560 = vmatprep.subr.bf16.mxu0 %v126
    %561 = vmatpush1.bf16.msra.mxu0 %v125
    %562 = vmatprep.subr.bf16.mxu0 %v128
    %563 = vmatpush1.bf16.msra.mxu0 %v127
    %564 = vmatprep.subr.bf16.mxu0 %v130
    %565 = vmatpush1.bf16.msra.mxu0 %v129
    %566 = vmatprep.subr.bf16.mxu0 0
    %567 = vmatpush1.bf16.msra.mxu0 0
    %568 = vmatprep.subr.bf16.mxu0 0
    %569 = vmatpush1.bf16.msra.mxu0 0
    %570 = vmatprep.subr.bf16.mxu0 0
    %571 = vmatpush1.bf16.msra.mxu0 0
    %572 = vmatprep.subr.bf16.mxu0 0
    %573 = vmatpush1.bf16.msra.mxu0 0
    %574 = vmatprep.subr.bf16.mxu0 0
    %575 = vmatpush1.bf16.msra.mxu0 0
    %576 = vmatprep.subr.bf16.mxu0 0
    %577 = vmatpush1.bf16.msra.mxu0 0
    %578 = vmatprep.subr.bf16.mxu0 0
    %579 = vmatpush1.bf16.msra.mxu0 0
    %580 = vmatprep.subr.bf16.mxu0 0
    %581 = vmatpush1.bf16.msra.mxu0 0
    %582 = vmatprep.mubr.bf16.mxu0 0
    %583 = vmatmul.mubr.bf16.gmra.mrb[0].mxu0 %v542
    %v584 = vpop.f32.mrb[0].mxu0
    %v585 = vadd.f32 0.0, %v584
    %v586 = vpop.f32.mrb[0].mxu0
    %v587 = vadd.f32 0.0, %v586
    %v588 = vpop.f32.mrb[0].mxu0
    %v589 = vadd.f32 0.0, %v588
    %v590 = vpop.f32.mrb[0].mxu0
    %v591 = vadd.f32 0.0, %v590
    %592 = vmatprep.mubr.bf16.mxu0 0
    %593 = vmatmul.mubr.bf16.gmra.mrb[0].mxu0 %v543
    %v594 = vpop.f32.mrb[0].mxu0
    %v595 = vadd.f32 0.0, %v594
    %v596 = vpop.f32.mrb[0].mxu0
    %v597 = vadd.f32 0.0, %v596
    %v598 = vpop.f32.mrb[0].mxu0
    %v599 = vadd.f32 0.0, %v598
    %v600 = vpop.f32.mrb[0].mxu0
    %v601 = vadd.f32 0.0, %v600
    %602 = vmatprep.mubr.bf16.mxu0 0
    %603 = vmatmul.mubr.bf16.gmra.mrb[0].mxu0 %v544
    %v604 = vpop.f32.mrb[0].mxu0
    %v605 = vadd.f32 0.0, %v604
    %v606 = vpop.f32.mrb[0].mxu0
    %v607 = vadd.f32 0.0, %v606
    %v608 = vpop.f32.mrb[0].mxu0
    %v609 = vadd.f32 0.0, %v608
    %v610 = vpop.f32.mrb[0].mxu0
    %v611 = vadd.f32 0.0, %v610
    %612 = vmatprep.mubr.bf16.mxu0 0
    %613 = vmatmul.mubr.bf16.gmra.mrb[0].mxu0 %v545
    %v614 = vpop.f32.mrb[0].mxu0
    %v615 = vadd.f32 0.0, %v614
    %v616 = vpop.f32.mrb[0].mxu0
    %v617 = vadd.f32 0.0, %v616
    %v618 = vpop.f32.mrb[0].mxu0
    %v619 = vadd.f32 0.0, %v618
    %v620 = vpop.f32.mrb[0].mxu0
    %v621 = vadd.f32 0.0, %v620
    %622 = vdwg.mxu0
    %v623 = vmax.f32 %v585, 0.0
    %v624 = vmax.f32 %v587, 0.0
    %v625 = vmax.f32 %v589, 0.0
    %v626 = vmax.f32 %v591, 0.0
    %v627 = vmax.f32 %v595, 0.0
    %v628 = vmax.f32 %v597, 0.0
    %v629 = vmax.f32 %v599, 0.0
    %v630 = vmax.f32 %v601, 0.0
    %v631 = vmax.f32 %v605, 0.0
    %v632 = vmax.f32 %v607, 0.0
    %v633 = vmax.f32 %v609, 0.0
    %v634 = vmax.f32 %v611, 0.0
    %v635 = vmax.f32 %v615, 0.0
    %v636 = vmax.f32 %v617, 0.0
    %v637 = vmax.f32 %v619, 0.0
    %v638 = vmax.f32 %v621, 0.0
    %v639 = vpack.c.bf16 %v625, %v623
    %v640 = vpack.c.bf16 %v626, %v624
    %v641 = vpack.c.bf16 %v629, %v627
    %v642 = vpack.c.bf16 %v630, %v628
    %v643 = vpack.c.bf16 %v633, %v631
    %v644 = vpack.c.bf16 %v634, %v632
    %v645 = vpack.c.bf16 %v637, %v635
    %v646 = vpack.c.bf16 %v638, %v636
    %647 = vmatprep.subr.bf16.mxu0 %v373
    %648 = vmatpush1.bf16.msra.mxu0 %v372
    %649 = vmatprep.subr.bf16.mxu0 %v375
    %650 = vmatpush1.bf16.msra.mxu0 %v374
    %651 = vmatprep.subr.bf16.mxu0 %v377
    %652 = vmatpush1.bf16.msra.mxu0 %v376
    %653 = vmatprep.subr.bf16.mxu0 %v379
    %654 = vmatpush1.bf16.msra.mxu0 %v378
    %655 = vmatprep.subr.bf16.mxu0 %v381
    %656 = vmatpush1.bf16.msra.mxu0 %v380
    %657 = vmatprep.subr.bf16.mxu0 %v383
    %658 = vmatpush1.bf16.msra.mxu0 %v382
    %659 = vmatprep.subr.bf16.mxu0 %v385
    %660 = vmatpush1.bf16.msra.mxu0 %v384
    %661 = vmatprep.subr.bf16.mxu0 %v387
    %662 = vmatpush1.bf16.msra.mxu0 %v386
    %663 = vmatprep.subr.bf16.mxu0 %v389
    %664 = vmatpush1.bf16.msra.mxu0 %v388
    %665 = vmatprep.subr.bf16.mxu0 %v391
    %666 = vmatpush1.bf16.msra.mxu0 %v390
    %667 = vmatprep.subr.bf16.mxu0 %v393
    %668 = vmatpush1.bf16.msra.mxu0 %v392
    %669 = vmatprep.subr.bf16.mxu0 %v395
    %670 = vmatpush1.bf16.msra.mxu0 %v394
    %671 = vmatprep.subr.bf16.mxu0 %v397
    %672 = vmatpush1.bf16.msra.mxu0 %v396
    %673 = vmatprep.subr.bf16.mxu0 %v399
    %674 = vmatpush1.bf16.msra.mxu0 %v398
    %675 = vmatprep.subr.bf16.mxu0 %v401
    %676 = vmatpush1.bf16.msra.mxu0 %v400
    %677 = vmatprep.subr.bf16.mxu0 %v403
    %678 = vmatpush1.bf16.msra.mxu0 %v402
    %679 = vmatprep.mubr.bf16.mxu0 %v640
    %680 = vmatmul.mubr.bf16.gmra.mrb[0].mxu0 %v639
    %v681 = vpop.f32.mrb[0].mxu0
    %v682 = vadd.f32 0.0, %v681
    %v683 = vpop.f32.mrb[0].mxu0
    %v684 = vadd.f32 0.0, %v683
    %v685 = vpop.f32.mrb[0].mxu0
    %v686 = vadd.f32 0.0, %v685
    %v687 = vpop.f32.mrb[0].mxu0
    %v688 = vadd.f32 0.0, %v687
    %689 = vmatprep.mubr.bf16.mxu0 %v642
    %690 = vmatmul.mubr.bf16.gmra.mrb[0].mxu0 %v641
    %v691 = vpop.f32.mrb[0].mxu0
    %v692 = vadd.f32 0.0, %v691
    %v693 = vpop.f32.mrb[0].mxu0
    %v694 = vadd.f32 0.0, %v693
    %v695 = vpop.f32.mrb[0].mxu0
    %v696 = vadd.f32 0.0, %v695
    %v697 = vpop.f32.mrb[0].mxu0
    %v698 = vadd.f32 0.0, %v697
    %699 = vmatprep.mubr.bf16.mxu0 %v644
    %700 = vmatmul.mubr.bf16.gmra.mrb[0].mxu0 %v643
    %v701 = vpop.f32.mrb[0].mxu0
    %v702 = vadd.f32 0.0, %v701
    %v703 = vpop.f32.mrb[0].mxu0
    %v704 = vadd.f32 0.0, %v703
    %v705 = vpop.f32.mrb[0].mxu0
    %v706 = vadd.f32 0.0, %v705
    %v707 = vpop.f32.mrb[0].mxu0
    %v708 = vadd.f32 0.0, %v707
    %709 = vmatprep.mubr.bf16.mxu0 %v646
    %710 = vmatmul.mubr.bf16.gmra.mrb[0].mxu0 %v645
    %v711 = vpop.f32.mrb[0].mxu0
    %v712 = vadd.f32 0.0, %v711
    %v713 = vpop.f32.mrb[0].mxu0
    %v714 = vadd.f32 0.0, %v713
    %v715 = vpop.f32.mrb[0].mxu0
    %v716 = vadd.f32 0.0, %v715
    %v717 = vpop.f32.mrb[0].mxu0
    %v718 = vadd.f32 0.0, %v717
    %719 = vdwg.mxu0
    %v720 = vmax.f32 %v682, %v702
    %v721 = vmax.f32 %v684, %v704
    %v722 = vmax.f32 %v686, %v706
    %v723 = vmax.f32 %v688, %v708
    %v724 = vmax.f32 %v692, %v712
    %v725 = vmax.f32 %v694, %v714
    %v726 = vmax.f32 %v696, %v716
    %v727 = vmax.f32 %v698, %v718
    %v728 = vmax.f32 %v509, %v720
    %v729 = vmax.f32 %v510, %v721
    %v730 = vmax.f32 %v511, %v722
    %v731 = vmax.f32 %v512, %v723
    %v732 = vmax.f32 %v513, %v724
    %v733 = vmax.f32 %v514, %v725
    %v734 = vmax.f32 %v515, %v726
    %v735 = vmax.f32 %v516, %v727
    %s736 = scalar_lea.vmem %s0, 64
    %v737 = vld [vmem:[%s736] sm:$0xf]
    %v738 = vld [vmem:[%s736 + $0x4] sm:$0xf]
    %v739 = vld [vmem:[%s736 + $0x8] sm:$0xf]
    %v740 = vld [vmem:[%s736 + $0xc] sm:$0xf]
    %v741 = vld [vmem:[%s736 + $0x10] sm:$0xf]
    %v742 = vld [vmem:[%s736 + $0x14] sm:$0xf]
    %v743 = vld [vmem:[%s736 + $0x18] sm:$0xf]
    %v744 = vld [vmem:[%s736 + $0x1c] sm:$0xf]
    %v753 = vunpack.c.l.b16 %v737
    %v754 = vunpack.c.l.b16 %v738
    %v755 = vunpack.c.l.b16 %v739
    %v756 = vunpack.c.l.b16 %v740
    %v757 = vunpack.c.l.b16 %v741
    %v758 = vunpack.c.l.b16 %v742
    %v759 = vunpack.c.l.b16 %v743
    %v760 = vunpack.c.l.b16 %v744
    %v761 = vpack.c.b16 %v754, %v753
    %v762 = vpack.c.b16 %v756, %v755
    %v763 = vpack.c.b16 %v758, %v757
    %v764 = vpack.c.b16 %v760, %v759
    %769 = vmatprep.subr.bf16.mxu0 %v116
    %770 = vmatpush1.bf16.msra.mxu0 %v115
    %771 = vmatprep.subr.bf16.mxu0 %v118
    %772 = vmatpush1.bf16.msra.mxu0 %v117
    %773 = vmatprep.subr.bf16.mxu0 %v120
    %774 = vmatpush1.bf16.msra.mxu0 %v119
    %775 = vmatprep.subr.bf16.mxu0 %v122
    %776 = vmatpush1.bf16.msra.mxu0 %v121
    %777 = vmatprep.subr.bf16.mxu0 %v124
    %778 = vmatpush1.bf16.msra.mxu0 %v123
    %779 = vmatprep.subr.bf16.mxu0 %v126
    %780 = vmatpush1.bf16.msra.mxu0 %v125
    %781 = vmatprep.subr.bf16.mxu0 %v128
    %782 = vmatpush1.bf16.msra.mxu0 %v127
    %783 = vmatprep.subr.bf16.mxu0 %v130
    %784 = vmatpush1.bf16.msra.mxu0 %v129
    %785 = vmatprep.subr.bf16.mxu0 0
    %786 = vmatpush1.bf16.msra.mxu0 0
    %787 = vmatprep.subr.bf16.mxu0 0
    %788 = vmatpush1.bf16.msra.mxu0 0
    %789 = vmatprep.subr.bf16.mxu0 0
    %790 = vmatpush1.bf16.msra.mxu0 0
    %791 = vmatprep.subr.bf16.mxu0 0
    %792 = vmatpush1.bf16.msra.mxu0 0
    %793 = vmatprep.subr.bf16.mxu0 0
    %794 = vmatpush1.bf16.msra.mxu0 0
    %795 = vmatprep.subr.bf16.mxu0 0
    %796 = vmatpush1.bf16.msra.mxu0 0
    %797 = vmatprep.subr.bf16.mxu0 0
    %798 = vmatpush1.bf16.msra.mxu0 0
    %799 = vmatprep.subr.bf16.mxu0 0
    %800 = vmatpush1.bf16.msra.mxu0 0
    %801 = vmatprep.mubr.bf16.mxu0 0
    %802 = vmatmul.mubr.bf16.gmra.mrb[0].mxu0 %v761
    %v803 = vpop.f32.mrb[0].mxu0
    %v804 = vadd.f32 0.0, %v803
    %v805 = vpop.f32.mrb[0].mxu0
    %v806 = vadd.f32 0.0, %v805
    %v807 = vpop.f32.mrb[0].mxu0
    %v808 = vadd.f32 0.0, %v807
    %v809 = vpop.f32.mrb[0].mxu0
    %v810 = vadd.f32 0.0, %v809
    %811 = vmatprep.mubr.bf16.mxu0 0
    %812 = vmatmul.mubr.bf16.gmra.mrb[0].mxu0 %v762
    %v813 = vpop.f32.mrb[0].mxu0
    %v814 = vadd.f32 0.0, %v813
    %v815 = vpop.f32.mrb[0].mxu0
    %v816 = vadd.f32 0.0, %v815
    %v817 = vpop.f32.mrb[0].mxu0
    %v818 = vadd.f32 0.0, %v817
    %v819 = vpop.f32.mrb[0].mxu0
    %v820 = vadd.f32 0.0, %v819
    %821 = vmatprep.mubr.bf16.mxu0 0
    %822 = vmatmul.mubr.bf16.gmra.mrb[0].mxu0 %v763
    %v823 = vpop.f32.mrb[0].mxu0
    %v824 = vadd.f32 0.0, %v823
    %v825 = vpop.f32.mrb[0].mxu0
    %v826 = vadd.f32 0.0, %v825
    %v827 = vpop.f32.mrb[0].mxu0
    %v828 = vadd.f32 0.0, %v827
    %v829 = vpop.f32.mrb[0].mxu0
    %v830 = vadd.f32 0.0, %v829
    %831 = vmatprep.mubr.bf16.mxu0 0
    %832 = vmatmul.mubr.bf16.gmra.mrb[0].mxu0 %v764
    %v833 = vpop.f32.mrb[0].mxu0
    %v834 = vadd.f32 0.0, %v833
    %v835 = vpop.f32.mrb[0].mxu0
    %v836 = vadd.f32 0.0, %v835
    %v837 = vpop.f32.mrb[0].mxu0
    %v838 = vadd.f32 0.0, %v837
    %v839 = vpop.f32.mrb[0].mxu0
    %v840 = vadd.f32 0.0, %v839
    %841 = vdwg.mxu0
    %v842 = vmax.f32 %v804, 0.0
    %v843 = vmax.f32 %v806, 0.0
    %v844 = vmax.f32 %v808, 0.0
    %v845 = vmax.f32 %v810, 0.0
    %v846 = vmax.f32 %v814, 0.0
    %v847 = vmax.f32 %v816, 0.0
    %v848 = vmax.f32 %v818, 0.0
    %v849 = vmax.f32 %v820, 0.0
    %v850 = vmax.f32 %v824, 0.0
    %v851 = vmax.f32 %v826, 0.0
    %v852 = vmax.f32 %v828, 0.0
    %v853 = vmax.f32 %v830, 0.0
    %v854 = vmax.f32 %v834, 0.0
    %v855 = vmax.f32 %v836, 0.0
    %v856 = vmax.f32 %v838, 0.0
    %v857 = vmax.f32 %v840, 0.0
    %v858 = vpack.c.bf16 %v844, %v842
    %v859 = vpack.c.bf16 %v845, %v843
    %v860 = vpack.c.bf16 %v848, %v846
    %v861 = vpack.c.bf16 %v849, %v847
    %v862 = vpack.c.bf16 %v852, %v850
    %v863 = vpack.c.bf16 %v853, %v851
    %v864 = vpack.c.bf16 %v856, %v854
    %v865 = vpack.c.bf16 %v857, %v855
    %866 = vmatprep.subr.bf16.mxu0 %v373
    %867 = vmatpush1.bf16.msra.mxu0 %v372
    %868 = vmatprep.subr.bf16.mxu0 %v375
    %869 = vmatpush1.bf16.msra.mxu0 %v374
    %870 = vmatprep.subr.bf16.mxu0 %v377
    %871 = vmatpush1.bf16.msra.mxu0 %v376
    %872 = vmatprep.subr.bf16.mxu0 %v379
    %873 = vmatpush1.bf16.msra.mxu0 %v378
    %874 = vmatprep.subr.bf16.mxu0 %v381
    %875 = vmatpush1.bf16.msra.mxu0 %v380
    %876 = vmatprep.subr.bf16.mxu0 %v383
    %877 = vmatpush1.bf16.msra.mxu0 %v382
    %878 = vmatprep.subr.bf16.mxu0 %v385
    %879 = vmatpush1.bf16.msra.mxu0 %v384
    %880 = vmatprep.subr.bf16.mxu0 %v387
    %881 = vmatpush1.bf16.msra.mxu0 %v386
    %882 = vmatprep.subr.bf16.mxu0 %v389
    %883 = vmatpush1.bf16.msra.mxu0 %v388
    %884 = vmatprep.subr.bf16.mxu0 %v391
    %885 = vmatpush1.bf16.msra.mxu0 %v390
    %886 = vmatprep.subr.bf16.mxu0 %v393
    %887 = vmatpush1.bf16.msra.mxu0 %v392
    %888 = vmatprep.subr.bf16.mxu0 %v395
    %889 = vmatpush1.bf16.msra.mxu0 %v394
    %890 = vmatprep.subr.bf16.mxu0 %v397
    %891 = vmatpush1.bf16.msra.mxu0 %v396
    %892 = vmatprep.subr.bf16.mxu0 %v399
    %893 = vmatpush1.bf16.msra.mxu0 %v398
    %894 = vmatprep.subr.bf16.mxu0 %v401
    %895 = vmatpush1.bf16.msra.mxu0 %v400
    %896 = vmatprep.subr.bf16.mxu0 %v403
    %897 = vmatpush1.bf16.msra.mxu0 %v402
    %898 = vmatprep.mubr.bf16.mxu0 %v859
    %899 = vmatmul.mubr.bf16.gmra.mrb[0].mxu0 %v858
    %v900 = vpop.f32.mrb[0].mxu0
    %v901 = vadd.f32 0.0, %v900
    %v902 = vpop.f32.mrb[0].mxu0
    %v903 = vadd.f32 0.0, %v902
    %v904 = vpop.f32.mrb[0].mxu0
    %v905 = vadd.f32 0.0, %v904
    %v906 = vpop.f32.mrb[0].mxu0
    %v907 = vadd.f32 0.0, %v906
    %908 = vmatprep.mubr.bf16.mxu0 %v861
    %909 = vmatmul.mubr.bf16.gmra.mrb[0].mxu0 %v860
    %v910 = vpop.f32.mrb[0].mxu0
    %v911 = vadd.f32 0.0, %v910
    %v912 = vpop.f32.mrb[0].mxu0
    %v913 = vadd.f32 0.0, %v912
    %v914 = vpop.f32.mrb[0].mxu0
    %v915 = vadd.f32 0.0, %v914
    %v916 = vpop.f32.mrb[0].mxu0
    %v917 = vadd.f32 0.0, %v916
    %918 = vmatprep.mubr.bf16.mxu0 %v863
    %919 = vmatmul.mubr.bf16.gmra.mrb[0].mxu0 %v862
    %v920 = vpop.f32.mrb[0].mxu0
    %v921 = vadd.f32 0.0, %v920
    %v922 = vpop.f32.mrb[0].mxu0
    %v923 = vadd.f32 0.0, %v922
    %v924 = vpop.f32.mrb[0].mxu0
    %v925 = vadd.f32 0.0, %v924
    %v926 = vpop.f32.mrb[0].mxu0
    %v927 = vadd.f32 0.0, %v926
    %928 = vmatprep.mubr.bf16.mxu0 %v865
    %929 = vmatmul.mubr.bf16.gmra.mrb[0].mxu0 %v864
    %v930 = vpop.f32.mrb[0].mxu0
    %v931 = vadd.f32 0.0, %v930
    %v932 = vpop.f32.mrb[0].mxu0
    %v933 = vadd.f32 0.0, %v932
    %v934 = vpop.f32.mrb[0].mxu0
    %v935 = vadd.f32 0.0, %v934
    %v936 = vpop.f32.mrb[0].mxu0
    %v937 = vadd.f32 0.0, %v936
    %938 = vdwg.mxu0
    %v939 = vmax.f32 %v901, %v921
    %v940 = vmax.f32 %v903, %v923
    %v941 = vmax.f32 %v905, %v925
    %v942 = vmax.f32 %v907, %v927
    %v943 = vmax.f32 %v911, %v931
    %v944 = vmax.f32 %v913, %v933
    %v945 = vmax.f32 %v915, %v935
    %v946 = vmax.f32 %v917, %v937
    %v947 = vmax.f32 %v728, %v939
    %v948 = vmax.f32 %v729, %v940
    %v949 = vmax.f32 %v730, %v941
    %v950 = vmax.f32 %v731, %v942
    %v951 = vmax.f32 %v732, %v943
    %v952 = vmax.f32 %v733, %v944
    %v953 = vmax.f32 %v734, %v945
    %v954 = vmax.f32 %v735, %v946
    %s955 = scalar_lea.vmem %s0, 96
    %v956 = vld [vmem:[%s955] sm:$0xf]
    %v957 = vld [vmem:[%s955 + $0x4] sm:$0xf]
    %v958 = vld [vmem:[%s955 + $0x8] sm:$0xf]
    %v959 = vld [vmem:[%s955 + $0xc] sm:$0xf]
    %v960 = vld [vmem:[%s955 + $0x10] sm:$0xf]
    %v961 = vld [vmem:[%s955 + $0x14] sm:$0xf]
    %v962 = vld [vmem:[%s955 + $0x18] sm:$0xf]
    %v963 = vld [vmem:[%s955 + $0x1c] sm:$0xf]
    %v972 = vunpack.c.l.b16 %v956
    %v973 = vunpack.c.l.b16 %v957
    %v974 = vunpack.c.l.b16 %v958
    %v975 = vunpack.c.l.b16 %v959
    %v976 = vunpack.c.l.b16 %v960
    %v977 = vunpack.c.l.b16 %v961
    %v978 = vunpack.c.l.b16 %v962
    %v979 = vunpack.c.l.b16 %v963
    %v980 = vpack.c.b16 %v973, %v972
    %v981 = vpack.c.b16 %v975, %v974
    %v982 = vpack.c.b16 %v977, %v976
    %v983 = vpack.c.b16 %v979, %v978
    %988 = vmatprep.subr.bf16.mxu0 %v116
    %989 = vmatpush1.bf16.msra.mxu0 %v115
    %990 = vmatprep.subr.bf16.mxu0 %v118
    %991 = vmatpush1.bf16.msra.mxu0 %v117
    %992 = vmatprep.subr.bf16.mxu0 %v120
    %993 = vmatpush1.bf16.msra.mxu0 %v119
    %994 = vmatprep.subr.bf16.mxu0 %v122
    %995 = vmatpush1.bf16.msra.mxu0 %v121
    %996 = vmatprep.subr.bf16.mxu0 %v124
    %997 = vmatpush1.bf16.msra.mxu0 %v123
    %998 = vmatprep.subr.bf16.mxu0 %v126
    %999 = vmatpush1.bf16.msra.mxu0 %v125
    %1000 = vmatprep.subr.bf16.mxu0 %v128
    %1001 = vmatpush1.bf16.msra.mxu0 %v127
    %1002 = vmatprep.subr.bf16.mxu0 %v130
    %1003 = vmatpush1.bf16.msra.mxu0 %v129
    %1004 = vmatprep.subr.bf16.mxu0 0
    %1005 = vmatpush1.bf16.msra.mxu0 0
    %1006 = vmatprep.subr.bf16.mxu0 0
    %1007 = vmatpush1.bf16.msra.mxu0 0
    %1008 = vmatprep.subr.bf16.mxu0 0
    %1009 = vmatpush1.bf16.msra.mxu0 0
    %1010 = vmatprep.subr.bf16.mxu0 0
    %1011 = vmatpush1.bf16.msra.mxu0 0
    %1012 = vmatprep.subr.bf16.mxu0 0
    %1013 = vmatpush1.bf16.msra.mxu0 0
    %1014 = vmatprep.subr.bf16.mxu0 0
    %1015 = vmatpush1.bf16.msra.mxu0 0
    %1016 = vmatprep.subr.bf16.mxu0 0
    %1017 = vmatpush1.bf16.msra.mxu0 0
    %1018 = vmatprep.subr.bf16.mxu0 0
    %1019 = vmatpush1.bf16.msra.mxu0 0
    %1020 = vmatprep.mubr.bf16.mxu0 0
    %1021 = vmatmul.mubr.bf16.gmra.mrb[0].mxu0 %v980
    %v1022 = vpop.f32.mrb[0].mxu0
    %v1023 = vadd.f32 0.0, %v1022
    %v1024 = vpop.f32.mrb[0].mxu0
    %v1025 = vadd.f32 0.0, %v1024
    %v1026 = vpop.f32.mrb[0].mxu0
    %v1027 = vadd.f32 0.0, %v1026
    %v1028 = vpop.f32.mrb[0].mxu0
    %v1029 = vadd.f32 0.0, %v1028
    %1030 = vmatprep.mubr.bf16.mxu0 0
    %1031 = vmatmul.mubr.bf16.gmra.mrb[0].mxu0 %v981
    %v1032 = vpop.f32.mrb[0].mxu0
    %v1033 = vadd.f32 0.0, %v1032
    %v1034 = vpop.f32.mrb[0].mxu0
    %v1035 = vadd.f32 0.0, %v1034
    %v1036 = vpop.f32.mrb[0].mxu0
    %v1037 = vadd.f32 0.0, %v1036
    %v1038 = vpop.f32.mrb[0].mxu0
    %v1039 = vadd.f32 0.0, %v1038
    %1040 = vmatprep.mubr.bf16.mxu0 0
    %1041 = vmatmul.mubr.bf16.gmra.mrb[0].mxu0 %v982
    %v1042 = vpop.f32.mrb[0].mxu0
    %v1043 = vadd.f32 0.0, %v1042
    %v1044 = vpop.f32.mrb[0].mxu0
    %v1045 = vadd.f32 0.0, %v1044
    %v1046 = vpop.f32.mrb[0].mxu0
    %v1047 = vadd.f32 0.0, %v1046
    %v1048 = vpop.f32.mrb[0].mxu0
    %v1049 = vadd.f32 0.0, %v1048
    %1050 = vmatprep.mubr.bf16.mxu0 0
    %1051 = vmatmul.mubr.bf16.gmra.mrb[0].mxu0 %v983
    %v1052 = vpop.f32.mrb[0].mxu0
    %v1053 = vadd.f32 0.0, %v1052
    %v1054 = vpop.f32.mrb[0].mxu0
    %v1055 = vadd.f32 0.0, %v1054
    %v1056 = vpop.f32.mrb[0].mxu0
    %v1057 = vadd.f32 0.0, %v1056
    %v1058 = vpop.f32.mrb[0].mxu0
    %v1059 = vadd.f32 0.0, %v1058
    %1060 = vdwg.mxu0
    %v1061 = vmax.f32 %v1023, 0.0
    %v1062 = vmax.f32 %v1025, 0.0
    %v1063 = vmax.f32 %v1027, 0.0
    %v1064 = vmax.f32 %v1029, 0.0
    %v1065 = vmax.f32 %v1033, 0.0
    %v1066 = vmax.f32 %v1035, 0.0
    %v1067 = vmax.f32 %v1037, 0.0
    %v1068 = vmax.f32 %v1039, 0.0
    %v1069 = vmax.f32 %v1043, 0.0
    %v1070 = vmax.f32 %v1045, 0.0
    %v1071 = vmax.f32 %v1047, 0.0
    %v1072 = vmax.f32 %v1049, 0.0
    %v1073 = vmax.f32 %v1053, 0.0
    %v1074 = vmax.f32 %v1055, 0.0
    %v1075 = vmax.f32 %v1057, 0.0
    %v1076 = vmax.f32 %v1059, 0.0
    %v1077 = vpack.c.bf16 %v1063, %v1061
    %v1078 = vpack.c.bf16 %v1064, %v1062
    %v1079 = vpack.c.bf16 %v1067, %v1065
    %v1080 = vpack.c.bf16 %v1068, %v1066
    %v1081 = vpack.c.bf16 %v1071, %v1069
    %v1082 = vpack.c.bf16 %v1072, %v1070
    %v1083 = vpack.c.bf16 %v1075, %v1073
    %v1084 = vpack.c.bf16 %v1076, %v1074
    %1085 = vmatprep.subr.bf16.mxu0 %v373
    %1086 = vmatpush1.bf16.msra.mxu0 %v372
    %1087 = vmatprep.subr.bf16.mxu0 %v375
    %1088 = vmatpush1.bf16.msra.mxu0 %v374
    %1089 = vmatprep.subr.bf16.mxu0 %v377
    %1090 = vmatpush1.bf16.msra.mxu0 %v376
    %1091 = vmatprep.subr.bf16.mxu0 %v379
    %1092 = vmatpush1.bf16.msra.mxu0 %v378
    %1093 = vmatprep.subr.bf16.mxu0 %v381
    %1094 = vmatpush1.bf16.msra.mxu0 %v380
    %1095 = vmatprep.subr.bf16.mxu0 %v383
    %1096 = vmatpush1.bf16.msra.mxu0 %v382
    %1097 = vmatprep.subr.bf16.mxu0 %v385
    %1098 = vmatpush1.bf16.msra.mxu0 %v384
    %1099 = vmatprep.subr.bf16.mxu0 %v387
    %1100 = vmatpush1.bf16.msra.mxu0 %v386
    %1101 = vmatprep.subr.bf16.mxu0 %v389
    %1102 = vmatpush1.bf16.msra.mxu0 %v388
    %1103 = vmatprep.subr.bf16.mxu0 %v391
    %1104 = vmatpush1.bf16.msra.mxu0 %v390
    %1105 = vmatprep.subr.bf16.mxu0 %v393
    %1106 = vmatpush1.bf16.msra.mxu0 %v392
    %1107 = vmatprep.subr.bf16.mxu0 %v395
    %1108 = vmatpush1.bf16.msra.mxu0 %v394
    %1109 = vmatprep.subr.bf16.mxu0 %v397
    %1110 = vmatpush1.bf16.msra.mxu0 %v396
    %1111 = vmatprep.subr.bf16.mxu0 %v399
    %1112 = vmatpush1.bf16.msra.mxu0 %v398
    %1113 = vmatprep.subr.bf16.mxu0 %v401
    %1114 = vmatpush1.bf16.msra.mxu0 %v400
    %1115 = vmatprep.subr.bf16.mxu0 %v403
    %1116 = vmatpush1.bf16.msra.mxu0 %v402
    %1117 = vmatprep.mubr.bf16.mxu0 %v1078
    %1118 = vmatmul.mubr.bf16.gmra.mrb[0].mxu0 %v1077
    %v1119 = vpop.f32.mrb[0].mxu0
    %v1120 = vadd.f32 0.0, %v1119
    %v1121 = vpop.f32.mrb[0].mxu0
    %v1122 = vadd.f32 0.0, %v1121
    %v1123 = vpop.f32.mrb[0].mxu0
    %v1124 = vadd.f32 0.0, %v1123
    %v1125 = vpop.f32.mrb[0].mxu0
    %v1126 = vadd.f32 0.0, %v1125
    %1127 = vmatprep.mubr.bf16.mxu0 %v1080
    %1128 = vmatmul.mubr.bf16.gmra.mrb[0].mxu0 %v1079
    %v1129 = vpop.f32.mrb[0].mxu0
    %v1130 = vadd.f32 0.0, %v1129
    %v1131 = vpop.f32.mrb[0].mxu0
    %v1132 = vadd.f32 0.0, %v1131
    %v1133 = vpop.f32.mrb[0].mxu0
    %v1134 = vadd.f32 0.0, %v1133
    %v1135 = vpop.f32.mrb[0].mxu0
    %v1136 = vadd.f32 0.0, %v1135
    %1137 = vmatprep.mubr.bf16.mxu0 %v1082
    %1138 = vmatmul.mubr.bf16.gmra.mrb[0].mxu0 %v1081
    %v1139 = vpop.f32.mrb[0].mxu0
    %v1140 = vadd.f32 0.0, %v1139
    %v1141 = vpop.f32.mrb[0].mxu0
    %v1142 = vadd.f32 0.0, %v1141
    %v1143 = vpop.f32.mrb[0].mxu0
    %v1144 = vadd.f32 0.0, %v1143
    %v1145 = vpop.f32.mrb[0].mxu0
    %v1146 = vadd.f32 0.0, %v1145
    %1147 = vmatprep.mubr.bf16.mxu0 %v1084
    %1148 = vmatmul.mubr.bf16.gmra.mrb[0].mxu0 %v1083
    %v1149 = vpop.f32.mrb[0].mxu0
    %v1150 = vadd.f32 0.0, %v1149
    %v1151 = vpop.f32.mrb[0].mxu0
    %v1152 = vadd.f32 0.0, %v1151
    %v1153 = vpop.f32.mrb[0].mxu0
    %v1154 = vadd.f32 0.0, %v1153
    %v1155 = vpop.f32.mrb[0].mxu0
    %v1156 = vadd.f32 0.0, %v1155
    %1157 = vdwg.mxu0
    %v1158 = vmax.f32 %v1120, %v1140
    %v1159 = vmax.f32 %v1122, %v1142
    %v1160 = vmax.f32 %v1124, %v1144
    %v1161 = vmax.f32 %v1126, %v1146
    %v1162 = vmax.f32 %v1130, %v1150
    %v1163 = vmax.f32 %v1132, %v1152
    %v1164 = vmax.f32 %v1134, %v1154
    %v1165 = vmax.f32 %v1136, %v1156
    %v1166 = vmax.f32 %v947, %v1158
    %v1167 = vmax.f32 %v948, %v1159
    %v1168 = vmax.f32 %v949, %v1160
    %v1169 = vmax.f32 %v950, %v1161
    %v1170 = vmax.f32 %v951, %v1162
    %v1171 = vmax.f32 %v952, %v1163
    %v1172 = vmax.f32 %v953, %v1164
    %v1173 = vmax.f32 %v954, %v1165
    %s1174 = scalar_lea.vmem %s0, 128
    %v1175 = vld [vmem:[%s1174] sm:$0xf]
    %v1176 = vld [vmem:[%s1174 + $0x4] sm:$0xf]
    %v1177 = vld [vmem:[%s1174 + $0x8] sm:$0xf]
    %v1178 = vld [vmem:[%s1174 + $0xc] sm:$0xf]
    %v1179 = vld [vmem:[%s1174 + $0x10] sm:$0xf]
    %v1180 = vld [vmem:[%s1174 + $0x14] sm:$0xf]
    %v1181 = vld [vmem:[%s1174 + $0x18] sm:$0xf]
    %v1182 = vld [vmem:[%s1174 + $0x1c] sm:$0xf]
    %v1191 = vunpack.c.l.b16 %v1175
    %v1192 = vunpack.c.l.b16 %v1176
    %v1193 = vunpack.c.l.b16 %v1177
    %v1194 = vunpack.c.l.b16 %v1178
    %v1195 = vunpack.c.l.b16 %v1179
    %v1196 = vunpack.c.l.b16 %v1180
    %v1197 = vunpack.c.l.b16 %v1181
    %v1198 = vunpack.c.l.b16 %v1182
    %v1199 = vpack.c.b16 %v1192, %v1191
    %v1200 = vpack.c.b16 %v1194, %v1193
    %v1201 = vpack.c.b16 %v1196, %v1195
    %v1202 = vpack.c.b16 %v1198, %v1197
    %1207 = vmatprep.subr.bf16.mxu0 %v116
    %1208 = vmatpush1.bf16.msra.mxu0 %v115
    %1209 = vmatprep.subr.bf16.mxu0 %v118
    %1210 = vmatpush1.bf16.msra.mxu0 %v117
    %1211 = vmatprep.subr.bf16.mxu0 %v120
    %1212 = vmatpush1.bf16.msra.mxu0 %v119
    %1213 = vmatprep.subr.bf16.mxu0 %v122
    %1214 = vmatpush1.bf16.msra.mxu0 %v121
    %1215 = vmatprep.subr.bf16.mxu0 %v124
    %1216 = vmatpush1.bf16.msra.mxu0 %v123
    %1217 = vmatprep.subr.bf16.mxu0 %v126
    %1218 = vmatpush1.bf16.msra.mxu0 %v125
    %1219 = vmatprep.subr.bf16.mxu0 %v128
    %1220 = vmatpush1.bf16.msra.mxu0 %v127
    %1221 = vmatprep.subr.bf16.mxu0 %v130
    %1222 = vmatpush1.bf16.msra.mxu0 %v129
    %1223 = vmatprep.subr.bf16.mxu0 0
    %1224 = vmatpush1.bf16.msra.mxu0 0
    %1225 = vmatprep.subr.bf16.mxu0 0
    %1226 = vmatpush1.bf16.msra.mxu0 0
    %1227 = vmatprep.subr.bf16.mxu0 0
    %1228 = vmatpush1.bf16.msra.mxu0 0
    %1229 = vmatprep.subr.bf16.mxu0 0
    %1230 = vmatpush1.bf16.msra.mxu0 0
    %1231 = vmatprep.subr.bf16.mxu0 0
    %1232 = vmatpush1.bf16.msra.mxu0 0
    %1233 = vmatprep.subr.bf16.mxu0 0
    %1234 = vmatpush1.bf16.msra.mxu0 0
    %1235 = vmatprep.subr.bf16.mxu0 0
    %1236 = vmatpush1.bf16.msra.mxu0 0
    %1237 = vmatprep.subr.bf16.mxu0 0
    %1238 = vmatpush1.bf16.msra.mxu0 0
    %1239 = vmatprep.mubr.bf16.mxu0 0
    %1240 = vmatmul.mubr.bf16.gmra.mrb[0].mxu0 %v1199
    %v1241 = vpop.f32.mrb[0].mxu0
    %v1242 = vadd.f32 0.0, %v1241
    %v1243 = vpop.f32.mrb[0].mxu0
    %v1244 = vadd.f32 0.0, %v1243
    %v1245 = vpop.f32.mrb[0].mxu0
    %v1246 = vadd.f32 0.0, %v1245
    %v1247 = vpop.f32.mrb[0].mxu0
    %v1248 = vadd.f32 0.0, %v1247
    %1249 = vmatprep.mubr.bf16.mxu0 0
    %1250 = vmatmul.mubr.bf16.gmra.mrb[0].mxu0 %v1200
    %v1251 = vpop.f32.mrb[0].mxu0
    %v1252 = vadd.f32 0.0, %v1251
    %v1253 = vpop.f32.mrb[0].mxu0
    %v1254 = vadd.f32 0.0, %v1253
    %v1255 = vpop.f32.mrb[0].mxu0
    %v1256 = vadd.f32 0.0, %v1255
    %v1257 = vpop.f32.mrb[0].mxu0
    %v1258 = vadd.f32 0.0, %v1257
    %1259 = vmatprep.mubr.bf16.mxu0 0
    %1260 = vmatmul.mubr.bf16.gmra.mrb[0].mxu0 %v1201
    %v1261 = vpop.f32.mrb[0].mxu0
    %v1262 = vadd.f32 0.0, %v1261
    %v1263 = vpop.f32.mrb[0].mxu0
    %v1264 = vadd.f32 0.0, %v1263
    %v1265 = vpop.f32.mrb[0].mxu0
    %v1266 = vadd.f32 0.0, %v1265
    %v1267 = vpop.f32.mrb[0].mxu0
    %v1268 = vadd.f32 0.0, %v1267
    %1269 = vmatprep.mubr.bf16.mxu0 0
    %1270 = vmatmul.mubr.bf16.gmra.mrb[0].mxu0 %v1202
    %v1271 = vpop.f32.mrb[0].mxu0
    %v1272 = vadd.f32 0.0, %v1271
    %v1273 = vpop.f32.mrb[0].mxu0
    %v1274 = vadd.f32 0.0, %v1273
    %v1275 = vpop.f32.mrb[0].mxu0
    %v1276 = vadd.f32 0.0, %v1275
    %v1277 = vpop.f32.mrb[0].mxu0
    %v1278 = vadd.f32 0.0, %v1277
    %1279 = vdwg.mxu0
    %v1280 = vmax.f32 %v1242, 0.0
    %v1281 = vmax.f32 %v1244, 0.0
    %v1282 = vmax.f32 %v1246, 0.0
    %v1283 = vmax.f32 %v1248, 0.0
    %v1284 = vmax.f32 %v1252, 0.0
    %v1285 = vmax.f32 %v1254, 0.0
    %v1286 = vmax.f32 %v1256, 0.0
    %v1287 = vmax.f32 %v1258, 0.0
    %v1288 = vmax.f32 %v1262, 0.0
    %v1289 = vmax.f32 %v1264, 0.0
    %v1290 = vmax.f32 %v1266, 0.0
    %v1291 = vmax.f32 %v1268, 0.0
    %v1292 = vmax.f32 %v1272, 0.0
    %v1293 = vmax.f32 %v1274, 0.0
    %v1294 = vmax.f32 %v1276, 0.0
    %v1295 = vmax.f32 %v1278, 0.0
    %v1296 = vpack.c.bf16 %v1282, %v1280
    %v1297 = vpack.c.bf16 %v1283, %v1281
    %v1298 = vpack.c.bf16 %v1286, %v1284
    %v1299 = vpack.c.bf16 %v1287, %v1285
    %v1300 = vpack.c.bf16 %v1290, %v1288
    %v1301 = vpack.c.bf16 %v1291, %v1289
    %v1302 = vpack.c.bf16 %v1294, %v1292
    %v1303 = vpack.c.bf16 %v1295, %v1293
    %1304 = vmatprep.subr.bf16.mxu0 %v373
    %1305 = vmatpush1.bf16.msra.mxu0 %v372
    %1306 = vmatprep.subr.bf16.mxu0 %v375
    %1307 = vmatpush1.bf16.msra.mxu0 %v374
    %1308 = vmatprep.subr.bf16.mxu0 %v377
    %1309 = vmatpush1.bf16.msra.mxu0 %v376
    %1310 = vmatprep.subr.bf16.mxu0 %v379
    %1311 = vmatpush1.bf16.msra.mxu0 %v378
    %1312 = vmatprep.subr.bf16.mxu0 %v381
    %1313 = vmatpush1.bf16.msra.mxu0 %v380
    %1314 = vmatprep.subr.bf16.mxu0 %v383
    %1315 = vmatpush1.bf16.msra.mxu0 %v382
    %1316 = vmatprep.subr.bf16.mxu0 %v385
    %1317 = vmatpush1.bf16.msra.mxu0 %v384
    %1318 = vmatprep.subr.bf16.mxu0 %v387
    %1319 = vmatpush1.bf16.msra.mxu0 %v386
    %1320 = vmatprep.subr.bf16.mxu0 %v389
    %1321 = vmatpush1.bf16.msra.mxu0 %v388
    %1322 = vmatprep.subr.bf16.mxu0 %v391
    %1323 = vmatpush1.bf16.msra.mxu0 %v390
    %1324 = vmatprep.subr.bf16.mxu0 %v393
    %1325 = vmatpush1.bf16.msra.mxu0 %v392
    %1326 = vmatprep.subr.bf16.mxu0 %v395
    %1327 = vmatpush1.bf16.msra.mxu0 %v394
    %1328 = vmatprep.subr.bf16.mxu0 %v397
    %1329 = vmatpush1.bf16.msra.mxu0 %v396
    %1330 = vmatprep.subr.bf16.mxu0 %v399
    %1331 = vmatpush1.bf16.msra.mxu0 %v398
    %1332 = vmatprep.subr.bf16.mxu0 %v401
    %1333 = vmatpush1.bf16.msra.mxu0 %v400
    %1334 = vmatprep.subr.bf16.mxu0 %v403
    %1335 = vmatpush1.bf16.msra.mxu0 %v402
    %1336 = vmatprep.mubr.bf16.mxu0 %v1297
    %1337 = vmatmul.mubr.bf16.gmra.mrb[0].mxu0 %v1296
    %v1338 = vpop.f32.mrb[0].mxu0
    %v1339 = vadd.f32 0.0, %v1338
    %v1340 = vpop.f32.mrb[0].mxu0
    %v1341 = vadd.f32 0.0, %v1340
    %v1342 = vpop.f32.mrb[0].mxu0
    %v1343 = vadd.f32 0.0, %v1342
    %v1344 = vpop.f32.mrb[0].mxu0
    %v1345 = vadd.f32 0.0, %v1344
    %1346 = vmatprep.mubr.bf16.mxu0 %v1299
    %1347 = vmatmul.mubr.bf16.gmra.mrb[0].mxu0 %v1298
    %v1348 = vpop.f32.mrb[0].mxu0
    %v1349 = vadd.f32 0.0, %v1348
    %v1350 = vpop.f32.mrb[0].mxu0
    %v1351 = vadd.f32 0.0, %v1350
    %v1352 = vpop.f32.mrb[0].mxu0
    %v1353 = vadd.f32 0.0, %v1352
    %v1354 = vpop.f32.mrb[0].mxu0
    %v1355 = vadd.f32 0.0, %v1354
    %1356 = vmatprep.mubr.bf16.mxu0 %v1301
    %1357 = vmatmul.mubr.bf16.gmra.mrb[0].mxu0 %v1300
    %v1358 = vpop.f32.mrb[0].mxu0
    %v1359 = vadd.f32 0.0, %v1358
    %v1360 = vpop.f32.mrb[0].mxu0
    %v1361 = vadd.f32 0.0, %v1360
    %v1362 = vpop.f32.mrb[0].mxu0
    %v1363 = vadd.f32 0.0, %v1362
    %v1364 = vpop.f32.mrb[0].mxu0
    %v1365 = vadd.f32 0.0, %v1364
    %1366 = vmatprep.mubr.bf16.mxu0 %v1303
    %1367 = vmatmul.mubr.bf16.gmra.mrb[0].mxu0 %v1302
    %v1368 = vpop.f32.mrb[0].mxu0
    %v1369 = vadd.f32 0.0, %v1368
    %v1370 = vpop.f32.mrb[0].mxu0
    %v1371 = vadd.f32 0.0, %v1370
    %v1372 = vpop.f32.mrb[0].mxu0
    %v1373 = vadd.f32 0.0, %v1372
    %v1374 = vpop.f32.mrb[0].mxu0
    %v1375 = vadd.f32 0.0, %v1374
    %1376 = vdwg.mxu0
    %v1377 = vmax.f32 %v1339, %v1359
    %v1378 = vmax.f32 %v1341, %v1361
    %v1379 = vmax.f32 %v1343, %v1363
    %v1380 = vmax.f32 %v1345, %v1365
    %v1381 = vmax.f32 %v1349, %v1369
    %v1382 = vmax.f32 %v1351, %v1371
    %v1383 = vmax.f32 %v1353, %v1373
    %v1384 = vmax.f32 %v1355, %v1375
    %v1385 = vmax.f32 %v1166, %v1377
    %v1386 = vmax.f32 %v1167, %v1378
    %v1387 = vmax.f32 %v1168, %v1379
    %v1388 = vmax.f32 %v1169, %v1380
    %v1389 = vmax.f32 %v1170, %v1381
    %v1390 = vmax.f32 %v1171, %v1382
    %v1391 = vmax.f32 %v1172, %v1383
    %v1392 = vmax.f32 %v1173, %v1384
    %s1393 = scalar_lea.vmem %s0, 160
    %v1394 = vld [vmem:[%s1393] sm:$0xf]
    %v1395 = vld [vmem:[%s1393 + $0x4] sm:$0xf]
    %v1396 = vld [vmem:[%s1393 + $0x8] sm:$0xf]
    %v1397 = vld [vmem:[%s1393 + $0xc] sm:$0xf]
    %v1398 = vld [vmem:[%s1393 + $0x10] sm:$0xf]
    %v1399 = vld [vmem:[%s1393 + $0x14] sm:$0xf]
    %v1400 = vld [vmem:[%s1393 + $0x18] sm:$0xf]
    %v1401 = vld [vmem:[%s1393 + $0x1c] sm:$0xf]
    %v1410 = vunpack.c.l.b16 %v1394
    %v1411 = vunpack.c.l.b16 %v1395
    %v1412 = vunpack.c.l.b16 %v1396
    %v1413 = vunpack.c.l.b16 %v1397
    %v1414 = vunpack.c.l.b16 %v1398
    %v1415 = vunpack.c.l.b16 %v1399
    %v1416 = vunpack.c.l.b16 %v1400
    %v1417 = vunpack.c.l.b16 %v1401
    %v1418 = vpack.c.b16 %v1411, %v1410
    %v1419 = vpack.c.b16 %v1413, %v1412
    %v1420 = vpack.c.b16 %v1415, %v1414
    %v1421 = vpack.c.b16 %v1417, %v1416
    %1426 = vmatprep.subr.bf16.mxu0 %v116
    %1427 = vmatpush1.bf16.msra.mxu0 %v115
    %1428 = vmatprep.subr.bf16.mxu0 %v118
    %1429 = vmatpush1.bf16.msra.mxu0 %v117
    %1430 = vmatprep.subr.bf16.mxu0 %v120
    %1431 = vmatpush1.bf16.msra.mxu0 %v119
    %1432 = vmatprep.subr.bf16.mxu0 %v122
    %1433 = vmatpush1.bf16.msra.mxu0 %v121
    %1434 = vmatprep.subr.bf16.mxu0 %v124
    %1435 = vmatpush1.bf16.msra.mxu0 %v123
    %1436 = vmatprep.subr.bf16.mxu0 %v126
    %1437 = vmatpush1.bf16.msra.mxu0 %v125
    %1438 = vmatprep.subr.bf16.mxu0 %v128
    %1439 = vmatpush1.bf16.msra.mxu0 %v127
    %1440 = vmatprep.subr.bf16.mxu0 %v130
    %1441 = vmatpush1.bf16.msra.mxu0 %v129
    %1442 = vmatprep.subr.bf16.mxu0 0
    %1443 = vmatpush1.bf16.msra.mxu0 0
    %1444 = vmatprep.subr.bf16.mxu0 0
    %1445 = vmatpush1.bf16.msra.mxu0 0
    %1446 = vmatprep.subr.bf16.mxu0 0
    %1447 = vmatpush1.bf16.msra.mxu0 0
    %1448 = vmatprep.subr.bf16.mxu0 0
    %1449 = vmatpush1.bf16.msra.mxu0 0
    %1450 = vmatprep.subr.bf16.mxu0 0
    %1451 = vmatpush1.bf16.msra.mxu0 0
    %1452 = vmatprep.subr.bf16.mxu0 0
    %1453 = vmatpush1.bf16.msra.mxu0 0
    %1454 = vmatprep.subr.bf16.mxu0 0
    %1455 = vmatpush1.bf16.msra.mxu0 0
    %1456 = vmatprep.subr.bf16.mxu0 0
    %1457 = vmatpush1.bf16.msra.mxu0 0
    %1458 = vmatprep.mubr.bf16.mxu0 0
    %1459 = vmatmul.mubr.bf16.gmra.mrb[0].mxu0 %v1418
    %v1460 = vpop.f32.mrb[0].mxu0
    %v1461 = vadd.f32 0.0, %v1460
    %v1462 = vpop.f32.mrb[0].mxu0
    %v1463 = vadd.f32 0.0, %v1462
    %v1464 = vpop.f32.mrb[0].mxu0
    %v1465 = vadd.f32 0.0, %v1464
    %v1466 = vpop.f32.mrb[0].mxu0
    %v1467 = vadd.f32 0.0, %v1466
    %1468 = vmatprep.mubr.bf16.mxu0 0
    %1469 = vmatmul.mubr.bf16.gmra.mrb[0].mxu0 %v1419
    %v1470 = vpop.f32.mrb[0].mxu0
    %v1471 = vadd.f32 0.0, %v1470
    %v1472 = vpop.f32.mrb[0].mxu0
    %v1473 = vadd.f32 0.0, %v1472
    %v1474 = vpop.f32.mrb[0].mxu0
    %v1475 = vadd.f32 0.0, %v1474
    %v1476 = vpop.f32.mrb[0].mxu0
    %v1477 = vadd.f32 0.0, %v1476
    %1478 = vmatprep.mubr.bf16.mxu0 0
    %1479 = vmatmul.mubr.bf16.gmra.mrb[0].mxu0 %v1420
    %v1480 = vpop.f32.mrb[0].mxu0
    %v1481 = vadd.f32 0.0, %v1480
    %v1482 = vpop.f32.mrb[0].mxu0
    %v1483 = vadd.f32 0.0, %v1482
    %v1484 = vpop.f32.mrb[0].mxu0
    %v1485 = vadd.f32 0.0, %v1484
    %v1486 = vpop.f32.mrb[0].mxu0
    %v1487 = vadd.f32 0.0, %v1486
    %1488 = vmatprep.mubr.bf16.mxu0 0
    %1489 = vmatmul.mubr.bf16.gmra.mrb[0].mxu0 %v1421
    %v1490 = vpop.f32.mrb[0].mxu0
    %v1491 = vadd.f32 0.0, %v1490
    %v1492 = vpop.f32.mrb[0].mxu0
    %v1493 = vadd.f32 0.0, %v1492
    %v1494 = vpop.f32.mrb[0].mxu0
    %v1495 = vadd.f32 0.0, %v1494
    %v1496 = vpop.f32.mrb[0].mxu0
    %v1497 = vadd.f32 0.0, %v1496
    %1498 = vdwg.mxu0
    %v1499 = vmax.f32 %v1461, 0.0
    %v1500 = vmax.f32 %v1463, 0.0
    %v1501 = vmax.f32 %v1465, 0.0
    %v1502 = vmax.f32 %v1467, 0.0
    %v1503 = vmax.f32 %v1471, 0.0
    %v1504 = vmax.f32 %v1473, 0.0
    %v1505 = vmax.f32 %v1475, 0.0
    %v1506 = vmax.f32 %v1477, 0.0
    %v1507 = vmax.f32 %v1481, 0.0
    %v1508 = vmax.f32 %v1483, 0.0
    %v1509 = vmax.f32 %v1485, 0.0
    %v1510 = vmax.f32 %v1487, 0.0
    %v1511 = vmax.f32 %v1491, 0.0
    %v1512 = vmax.f32 %v1493, 0.0
    %v1513 = vmax.f32 %v1495, 0.0
    %v1514 = vmax.f32 %v1497, 0.0
    %v1515 = vpack.c.bf16 %v1501, %v1499
    %v1516 = vpack.c.bf16 %v1502, %v1500
    %v1517 = vpack.c.bf16 %v1505, %v1503
    %v1518 = vpack.c.bf16 %v1506, %v1504
    %v1519 = vpack.c.bf16 %v1509, %v1507
    %v1520 = vpack.c.bf16 %v1510, %v1508
    %v1521 = vpack.c.bf16 %v1513, %v1511
    %v1522 = vpack.c.bf16 %v1514, %v1512
    %1523 = vmatprep.subr.bf16.mxu0 %v373
    %1524 = vmatpush1.bf16.msra.mxu0 %v372
    %1525 = vmatprep.subr.bf16.mxu0 %v375
    %1526 = vmatpush1.bf16.msra.mxu0 %v374
    %1527 = vmatprep.subr.bf16.mxu0 %v377
    %1528 = vmatpush1.bf16.msra.mxu0 %v376
    %1529 = vmatprep.subr.bf16.mxu0 %v379
    %1530 = vmatpush1.bf16.msra.mxu0 %v378
    %1531 = vmatprep.subr.bf16.mxu0 %v381
    %1532 = vmatpush1.bf16.msra.mxu0 %v380
    %1533 = vmatprep.subr.bf16.mxu0 %v383
    %1534 = vmatpush1.bf16.msra.mxu0 %v382
    %1535 = vmatprep.subr.bf16.mxu0 %v385
    %1536 = vmatpush1.bf16.msra.mxu0 %v384
    %1537 = vmatprep.subr.bf16.mxu0 %v387
    %1538 = vmatpush1.bf16.msra.mxu0 %v386
    %1539 = vmatprep.subr.bf16.mxu0 %v389
    %1540 = vmatpush1.bf16.msra.mxu0 %v388
    %1541 = vmatprep.subr.bf16.mxu0 %v391
    %1542 = vmatpush1.bf16.msra.mxu0 %v390
    %1543 = vmatprep.subr.bf16.mxu0 %v393
    %1544 = vmatpush1.bf16.msra.mxu0 %v392
    %1545 = vmatprep.subr.bf16.mxu0 %v395
    %1546 = vmatpush1.bf16.msra.mxu0 %v394
    %1547 = vmatprep.subr.bf16.mxu0 %v397
    %1548 = vmatpush1.bf16.msra.mxu0 %v396
    %1549 = vmatprep.subr.bf16.mxu0 %v399
    %1550 = vmatpush1.bf16.msra.mxu0 %v398
    %1551 = vmatprep.subr.bf16.mxu0 %v401
    %1552 = vmatpush1.bf16.msra.mxu0 %v400
    %1553 = vmatprep.subr.bf16.mxu0 %v403
    %1554 = vmatpush1.bf16.msra.mxu0 %v402
    %1555 = vmatprep.mubr.bf16.mxu0 %v1516
    %1556 = vmatmul.mubr.bf16.gmra.mrb[0].mxu0 %v1515
    %v1557 = vpop.f32.mrb[0].mxu0
    %v1558 = vadd.f32 0.0, %v1557
    %v1559 = vpop.f32.mrb[0].mxu0
    %v1560 = vadd.f32 0.0, %v1559
    %v1561 = vpop.f32.mrb[0].mxu0
    %v1562 = vadd.f32 0.0, %v1561
    %v1563 = vpop.f32.mrb[0].mxu0
    %v1564 = vadd.f32 0.0, %v1563
    %1565 = vmatprep.mubr.bf16.mxu0 %v1518
    %1566 = vmatmul.mubr.bf16.gmra.mrb[0].mxu0 %v1517
    %v1567 = vpop.f32.mrb[0].mxu0
    %v1568 = vadd.f32 0.0, %v1567
    %v1569 = vpop.f32.mrb[0].mxu0
    %v1570 = vadd.f32 0.0, %v1569
    %v1571 = vpop.f32.mrb[0].mxu0
    %v1572 = vadd.f32 0.0, %v1571
    %v1573 = vpop.f32.mrb[0].mxu0
    %v1574 = vadd.f32 0.0, %v1573
    %1575 = vmatprep.mubr.bf16.mxu0 %v1520
    %1576 = vmatmul.mubr.bf16.gmra.mrb[0].mxu0 %v1519
    %v1577 = vpop.f32.mrb[0].mxu0
    %v1578 = vadd.f32 0.0, %v1577
    %v1579 = vpop.f32.mrb[0].mxu0
    %v1580 = vadd.f32 0.0, %v1579
    %v1581 = vpop.f32.mrb[0].mxu0
    %v1582 = vadd.f32 0.0, %v1581
    %v1583 = vpop.f32.mrb[0].mxu0
    %v1584 = vadd.f32 0.0, %v1583
    %1585 = vmatprep.mubr.bf16.mxu0 %v1522
    %1586 = vmatmul.mubr.bf16.gmra.mrb[0].mxu0 %v1521
    %v1587 = vpop.f32.mrb[0].mxu0
    %v1588 = vadd.f32 0.0, %v1587
    %v1589 = vpop.f32.mrb[0].mxu0
    %v1590 = vadd.f32 0.0, %v1589
    %v1591 = vpop.f32.mrb[0].mxu0
    %v1592 = vadd.f32 0.0, %v1591
    %v1593 = vpop.f32.mrb[0].mxu0
    %v1594 = vadd.f32 0.0, %v1593
    %1595 = vdwg.mxu0
    %v1596 = vmax.f32 %v1558, %v1578
    %v1597 = vmax.f32 %v1560, %v1580
    %v1598 = vmax.f32 %v1562, %v1582
    %v1599 = vmax.f32 %v1564, %v1584
    %v1600 = vmax.f32 %v1568, %v1588
    %v1601 = vmax.f32 %v1570, %v1590
    %v1602 = vmax.f32 %v1572, %v1592
    %v1603 = vmax.f32 %v1574, %v1594
    %v1604 = vmax.f32 %v1385, %v1596
    %v1605 = vmax.f32 %v1386, %v1597
    %v1606 = vmax.f32 %v1387, %v1598
    %v1607 = vmax.f32 %v1388, %v1599
    %v1608 = vmax.f32 %v1389, %v1600
    %v1609 = vmax.f32 %v1390, %v1601
    %v1610 = vmax.f32 %v1391, %v1602
    %v1611 = vmax.f32 %v1392, %v1603
    %s1612 = scalar_lea.vmem %s0, 192
    %v1613 = vld [vmem:[%s1612] sm:$0xf]
    %v1614 = vld [vmem:[%s1612 + $0x4] sm:$0xf]
    %v1615 = vld [vmem:[%s1612 + $0x8] sm:$0xf]
    %v1616 = vld [vmem:[%s1612 + $0xc] sm:$0xf]
    %v1617 = vld [vmem:[%s1612 + $0x10] sm:$0xf]
    %v1618 = vld [vmem:[%s1612 + $0x14] sm:$0xf]
    %v1619 = vld [vmem:[%s1612 + $0x18] sm:$0xf]
    %v1620 = vld [vmem:[%s1612 + $0x1c] sm:$0xf]
    %v1629 = vunpack.c.l.b16 %v1613
    %v1630 = vunpack.c.l.b16 %v1614
    %v1631 = vunpack.c.l.b16 %v1615
    %v1632 = vunpack.c.l.b16 %v1616
    %v1633 = vunpack.c.l.b16 %v1617
    %v1634 = vunpack.c.l.b16 %v1618
    %v1635 = vunpack.c.l.b16 %v1619
    %v1636 = vunpack.c.l.b16 %v1620
    %v1637 = vpack.c.b16 %v1630, %v1629
    %v1638 = vpack.c.b16 %v1632, %v1631
    %v1639 = vpack.c.b16 %v1634, %v1633
    %v1640 = vpack.c.b16 %v1636, %v1635
    %1645 = vmatprep.subr.bf16.mxu0 %v116
    %1646 = vmatpush1.bf16.msra.mxu0 %v115
    %1647 = vmatprep.subr.bf16.mxu0 %v118
    %1648 = vmatpush1.bf16.msra.mxu0 %v117
    %1649 = vmatprep.subr.bf16.mxu0 %v120
    %1650 = vmatpush1.bf16.msra.mxu0 %v119
    %1651 = vmatprep.subr.bf16.mxu0 %v122
    %1652 = vmatpush1.bf16.msra.mxu0 %v121
    %1653 = vmatprep.subr.bf16.mxu0 %v124
    %1654 = vmatpush1.bf16.msra.mxu0 %v123
    %1655 = vmatprep.subr.bf16.mxu0 %v126
    %1656 = vmatpush1.bf16.msra.mxu0 %v125
    %1657 = vmatprep.subr.bf16.mxu0 %v128
    %1658 = vmatpush1.bf16.msra.mxu0 %v127
    %1659 = vmatprep.subr.bf16.mxu0 %v130
    %1660 = vmatpush1.bf16.msra.mxu0 %v129
    %1661 = vmatprep.subr.bf16.mxu0 0
    %1662 = vmatpush1.bf16.msra.mxu0 0
    %1663 = vmatprep.subr.bf16.mxu0 0
    %1664 = vmatpush1.bf16.msra.mxu0 0
    %1665 = vmatprep.subr.bf16.mxu0 0
    %1666 = vmatpush1.bf16.msra.mxu0 0
    %1667 = vmatprep.subr.bf16.mxu0 0
    %1668 = vmatpush1.bf16.msra.mxu0 0
    %1669 = vmatprep.subr.bf16.mxu0 0
    %1670 = vmatpush1.bf16.msra.mxu0 0
    %1671 = vmatprep.subr.bf16.mxu0 0
    %1672 = vmatpush1.bf16.msra.mxu0 0
    %1673 = vmatprep.subr.bf16.mxu0 0
    %1674 = vmatpush1.bf16.msra.mxu0 0
    %1675 = vmatprep.subr.bf16.mxu0 0
    %1676 = vmatpush1.bf16.msra.mxu0 0
    %1677 = vmatprep.mubr.bf16.mxu0 0
    %1678 = vmatmul.mubr.bf16.gmra.mrb[0].mxu0 %v1637
    %v1679 = vpop.f32.mrb[0].mxu0
    %v1680 = vadd.f32 0.0, %v1679
    %v1681 = vpop.f32.mrb[0].mxu0
    %v1682 = vadd.f32 0.0, %v1681
    %v1683 = vpop.f32.mrb[0].mxu0
    %v1684 = vadd.f32 0.0, %v1683
    %v1685 = vpop.f32.mrb[0].mxu0
    %v1686 = vadd.f32 0.0, %v1685
    %1687 = vmatprep.mubr.bf16.mxu0 0
    %1688 = vmatmul.mubr.bf16.gmra.mrb[0].mxu0 %v1638
    %v1689 = vpop.f32.mrb[0].mxu0
    %v1690 = vadd.f32 0.0, %v1689
    %v1691 = vpop.f32.mrb[0].mxu0
    %v1692 = vadd.f32 0.0, %v1691
    %v1693 = vpop.f32.mrb[0].mxu0
    %v1694 = vadd.f32 0.0, %v1693
    %v1695 = vpop.f32.mrb[0].mxu0
    %v1696 = vadd.f32 0.0, %v1695
    %1697 = vmatprep.mubr.bf16.mxu0 0
    %1698 = vmatmul.mubr.bf16.gmra.mrb[0].mxu0 %v1639
    %v1699 = vpop.f32.mrb[0].mxu0
    %v1700 = vadd.f32 0.0, %v1699
    %v1701 = vpop.f32.mrb[0].mxu0
    %v1702 = vadd.f32 0.0, %v1701
    %v1703 = vpop.f32.mrb[0].mxu0
    %v1704 = vadd.f32 0.0, %v1703
    %v1705 = vpop.f32.mrb[0].mxu0
    %v1706 = vadd.f32 0.0, %v1705
    %1707 = vmatprep.mubr.bf16.mxu0 0
    %1708 = vmatmul.mubr.bf16.gmra.mrb[0].mxu0 %v1640
    %v1709 = vpop.f32.mrb[0].mxu0
    %v1710 = vadd.f32 0.0, %v1709
    %v1711 = vpop.f32.mrb[0].mxu0
    %v1712 = vadd.f32 0.0, %v1711
    %v1713 = vpop.f32.mrb[0].mxu0
    %v1714 = vadd.f32 0.0, %v1713
    %v1715 = vpop.f32.mrb[0].mxu0
    %v1716 = vadd.f32 0.0, %v1715
    %1717 = vdwg.mxu0
    %v1718 = vmax.f32 %v1680, 0.0
    %v1719 = vmax.f32 %v1682, 0.0
    %v1720 = vmax.f32 %v1684, 0.0
    %v1721 = vmax.f32 %v1686, 0.0
    %v1722 = vmax.f32 %v1690, 0.0
    %v1723 = vmax.f32 %v1692, 0.0
    %v1724 = vmax.f32 %v1694, 0.0
    %v1725 = vmax.f32 %v1696, 0.0
    %v1726 = vmax.f32 %v1700, 0.0
    %v1727 = vmax.f32 %v1702, 0.0
    %v1728 = vmax.f32 %v1704, 0.0
    %v1729 = vmax.f32 %v1706, 0.0
    %v1730 = vmax.f32 %v1710, 0.0
    %v1731 = vmax.f32 %v1712, 0.0
    %v1732 = vmax.f32 %v1714, 0.0
    %v1733 = vmax.f32 %v1716, 0.0
    %v1734 = vpack.c.bf16 %v1720, %v1718
    %v1735 = vpack.c.bf16 %v1721, %v1719
    %v1736 = vpack.c.bf16 %v1724, %v1722
    %v1737 = vpack.c.bf16 %v1725, %v1723
    %v1738 = vpack.c.bf16 %v1728, %v1726
    %v1739 = vpack.c.bf16 %v1729, %v1727
    %v1740 = vpack.c.bf16 %v1732, %v1730
    %v1741 = vpack.c.bf16 %v1733, %v1731
    %1742 = vmatprep.subr.bf16.mxu0 %v373
    %1743 = vmatpush1.bf16.msra.mxu0 %v372
    %1744 = vmatprep.subr.bf16.mxu0 %v375
    %1745 = vmatpush1.bf16.msra.mxu0 %v374
    %1746 = vmatprep.subr.bf16.mxu0 %v377
    %1747 = vmatpush1.bf16.msra.mxu0 %v376
    %1748 = vmatprep.subr.bf16.mxu0 %v379
    %1749 = vmatpush1.bf16.msra.mxu0 %v378
    %1750 = vmatprep.subr.bf16.mxu0 %v381
    %1751 = vmatpush1.bf16.msra.mxu0 %v380
    %1752 = vmatprep.subr.bf16.mxu0 %v383
    %1753 = vmatpush1.bf16.msra.mxu0 %v382
    %1754 = vmatprep.subr.bf16.mxu0 %v385
    %1755 = vmatpush1.bf16.msra.mxu0 %v384
    %1756 = vmatprep.subr.bf16.mxu0 %v387
    %1757 = vmatpush1.bf16.msra.mxu0 %v386
    %1758 = vmatprep.subr.bf16.mxu0 %v389
    %1759 = vmatpush1.bf16.msra.mxu0 %v388
    %1760 = vmatprep.subr.bf16.mxu0 %v391
    %1761 = vmatpush1.bf16.msra.mxu0 %v390
    %1762 = vmatprep.subr.bf16.mxu0 %v393
    %1763 = vmatpush1.bf16.msra.mxu0 %v392
    %1764 = vmatprep.subr.bf16.mxu0 %v395
    %1765 = vmatpush1.bf16.msra.mxu0 %v394
    %1766 = vmatprep.subr.bf16.mxu0 %v397
    %1767 = vmatpush1.bf16.msra.mxu0 %v396
    %1768 = vmatprep.subr.bf16.mxu0 %v399
    %1769 = vmatpush1.bf16.msra.mxu0 %v398
    %1770 = vmatprep.subr.bf16.mxu0 %v401
    %1771 = vmatpush1.bf16.msra.mxu0 %v400
    %1772 = vmatprep.subr.bf16.mxu0 %v403
    %1773 = vmatpush1.bf16.msra.mxu0 %v402
    %1774 = vmatprep.mubr.bf16.mxu0 %v1735
    %1775 = vmatmul.mubr.bf16.gmra.mrb[0].mxu0 %v1734
    %v1776 = vpop.f32.mrb[0].mxu0
    %v1777 = vadd.f32 0.0, %v1776
    %v1778 = vpop.f32.mrb[0].mxu0
    %v1779 = vadd.f32 0.0, %v1778
    %v1780 = vpop.f32.mrb[0].mxu0
    %v1781 = vadd.f32 0.0, %v1780
    %v1782 = vpop.f32.mrb[0].mxu0
    %v1783 = vadd.f32 0.0, %v1782
    %1784 = vmatprep.mubr.bf16.mxu0 %v1737
    %1785 = vmatmul.mubr.bf16.gmra.mrb[0].mxu0 %v1736
    %v1786 = vpop.f32.mrb[0].mxu0
    %v1787 = vadd.f32 0.0, %v1786
    %v1788 = vpop.f32.mrb[0].mxu0
    %v1789 = vadd.f32 0.0, %v1788
    %v1790 = vpop.f32.mrb[0].mxu0
    %v1791 = vadd.f32 0.0, %v1790
    %v1792 = vpop.f32.mrb[0].mxu0
    %v1793 = vadd.f32 0.0, %v1792
    %1794 = vmatprep.mubr.bf16.mxu0 %v1739
    %1795 = vmatmul.mubr.bf16.gmra.mrb[0].mxu0 %v1738
    %v1796 = vpop.f32.mrb[0].mxu0
    %v1797 = vadd.f32 0.0, %v1796
    %v1798 = vpop.f32.mrb[0].mxu0
    %v1799 = vadd.f32 0.0, %v1798
    %v1800 = vpop.f32.mrb[0].mxu0
    %v1801 = vadd.f32 0.0, %v1800
    %v1802 = vpop.f32.mrb[0].mxu0
    %v1803 = vadd.f32 0.0, %v1802
    %1804 = vmatprep.mubr.bf16.mxu0 %v1741
    %1805 = vmatmul.mubr.bf16.gmra.mrb[0].mxu0 %v1740
    %v1806 = vpop.f32.mrb[0].mxu0
    %v1807 = vadd.f32 0.0, %v1806
    %v1808 = vpop.f32.mrb[0].mxu0
    %v1809 = vadd.f32 0.0, %v1808
    %v1810 = vpop.f32.mrb[0].mxu0
    %v1811 = vadd.f32 0.0, %v1810
    %v1812 = vpop.f32.mrb[0].mxu0
    %v1813 = vadd.f32 0.0, %v1812
    %1814 = vdwg.mxu0
    %v1815 = vmax.f32 %v1777, %v1797
    %v1816 = vmax.f32 %v1779, %v1799
    %v1817 = vmax.f32 %v1781, %v1801
    %v1818 = vmax.f32 %v1783, %v1803
    %v1819 = vmax.f32 %v1787, %v1807
    %v1820 = vmax.f32 %v1789, %v1809
    %v1821 = vmax.f32 %v1791, %v1811
    %v1822 = vmax.f32 %v1793, %v1813
    %v1823 = vmax.f32 %v1604, %v1815
    %v1824 = vmax.f32 %v1605, %v1816
    %v1825 = vmax.f32 %v1606, %v1817
    %v1826 = vmax.f32 %v1607, %v1818
    %v1827 = vmax.f32 %v1608, %v1819
    %v1828 = vmax.f32 %v1609, %v1820
    %v1829 = vmax.f32 %v1610, %v1821
    %v1830 = vmax.f32 %v1611, %v1822
    %s1831 = scalar_lea.vmem %s0, 224
    %v1832 = vld [vmem:[%s1831] sm:$0xf]
    %v1833 = vld [vmem:[%s1831 + $0x4] sm:$0xf]
    %v1834 = vld [vmem:[%s1831 + $0x8] sm:$0xf]
    %v1835 = vld [vmem:[%s1831 + $0xc] sm:$0xf]
    %v1836 = vld [vmem:[%s1831 + $0x10] sm:$0xf]
    %v1837 = vld [vmem:[%s1831 + $0x14] sm:$0xf]
    %v1838 = vld [vmem:[%s1831 + $0x18] sm:$0xf]
    %v1839 = vld [vmem:[%s1831 + $0x1c] sm:$0xf]
    %v1848 = vunpack.c.l.b16 %v1832
    %v1849 = vunpack.c.l.b16 %v1833
    %v1850 = vunpack.c.l.b16 %v1834
    %v1851 = vunpack.c.l.b16 %v1835
    %v1852 = vunpack.c.l.b16 %v1836
    %v1853 = vunpack.c.l.b16 %v1837
    %v1854 = vunpack.c.l.b16 %v1838
    %v1855 = vunpack.c.l.b16 %v1839
    %v1856 = vpack.c.b16 %v1849, %v1848
    %v1857 = vpack.c.b16 %v1851, %v1850
    %v1858 = vpack.c.b16 %v1853, %v1852
    %v1859 = vpack.c.b16 %v1855, %v1854
    %1864 = vmatprep.subr.bf16.mxu0 %v116
    %1865 = vmatpush1.bf16.msra.mxu0 %v115
    %1866 = vmatprep.subr.bf16.mxu0 %v118
    %1867 = vmatpush1.bf16.msra.mxu0 %v117
    %1868 = vmatprep.subr.bf16.mxu0 %v120
    %1869 = vmatpush1.bf16.msra.mxu0 %v119
    %1870 = vmatprep.subr.bf16.mxu0 %v122
    %1871 = vmatpush1.bf16.msra.mxu0 %v121
    %1872 = vmatprep.subr.bf16.mxu0 %v124
    %1873 = vmatpush1.bf16.msra.mxu0 %v123
    %1874 = vmatprep.subr.bf16.mxu0 %v126
    %1875 = vmatpush1.bf16.msra.mxu0 %v125
    %1876 = vmatprep.subr.bf16.mxu0 %v128
    %1877 = vmatpush1.bf16.msra.mxu0 %v127
    %1878 = vmatprep.subr.bf16.mxu0 %v130
    %1879 = vmatpush1.bf16.msra.mxu0 %v129
    %1880 = vmatprep.subr.bf16.mxu0 0
    %1881 = vmatpush1.bf16.msra.mxu0 0
    %1882 = vmatprep.subr.bf16.mxu0 0
    %1883 = vmatpush1.bf16.msra.mxu0 0
    %1884 = vmatprep.subr.bf16.mxu0 0
    %1885 = vmatpush1.bf16.msra.mxu0 0
    %1886 = vmatprep.subr.bf16.mxu0 0
    %1887 = vmatpush1.bf16.msra.mxu0 0
    %1888 = vmatprep.subr.bf16.mxu0 0
    %1889 = vmatpush1.bf16.msra.mxu0 0
    %1890 = vmatprep.subr.bf16.mxu0 0
    %1891 = vmatpush1.bf16.msra.mxu0 0
    %1892 = vmatprep.subr.bf16.mxu0 0
    %1893 = vmatpush1.bf16.msra.mxu0 0
    %1894 = vmatprep.subr.bf16.mxu0 0
    %1895 = vmatpush1.bf16.msra.mxu0 0
    %1896 = vmatprep.mubr.bf16.mxu0 0
    %1897 = vmatmul.mubr.bf16.gmra.mrb[0].mxu0 %v1856
    %v1898 = vpop.f32.mrb[0].mxu0
    %v1899 = vadd.f32 0.0, %v1898
    %v1900 = vpop.f32.mrb[0].mxu0
    %v1901 = vadd.f32 0.0, %v1900
    %v1902 = vpop.f32.mrb[0].mxu0
    %v1903 = vadd.f32 0.0, %v1902
    %v1904 = vpop.f32.mrb[0].mxu0
    %v1905 = vadd.f32 0.0, %v1904
    %1906 = vmatprep.mubr.bf16.mxu0 0
    %1907 = vmatmul.mubr.bf16.gmra.mrb[0].mxu0 %v1857
    %v1908 = vpop.f32.mrb[0].mxu0
    %v1909 = vadd.f32 0.0, %v1908
    %v1910 = vpop.f32.mrb[0].mxu0
    %v1911 = vadd.f32 0.0, %v1910
    %v1912 = vpop.f32.mrb[0].mxu0
    %v1913 = vadd.f32 0.0, %v1912
    %v1914 = vpop.f32.mrb[0].mxu0
    %v1915 = vadd.f32 0.0, %v1914
    %1916 = vmatprep.mubr.bf16.mxu0 0
    %1917 = vmatmul.mubr.bf16.gmra.mrb[0].mxu0 %v1858
    %v1918 = vpop.f32.mrb[0].mxu0
    %v1919 = vadd.f32 0.0, %v1918
    %v1920 = vpop.f32.mrb[0].mxu0
    %v1921 = vadd.f32 0.0, %v1920
    %v1922 = vpop.f32.mrb[0].mxu0
    %v1923 = vadd.f32 0.0, %v1922
    %v1924 = vpop.f32.mrb[0].mxu0
    %v1925 = vadd.f32 0.0, %v1924
    %1926 = vmatprep.mubr.bf16.mxu0 0
    %1927 = vmatmul.mubr.bf16.gmra.mrb[0].mxu0 %v1859
    %v1928 = vpop.f32.mrb[0].mxu0
    %v1929 = vadd.f32 0.0, %v1928
    %v1930 = vpop.f32.mrb[0].mxu0
    %v1931 = vadd.f32 0.0, %v1930
    %v1932 = vpop.f32.mrb[0].mxu0
    %v1933 = vadd.f32 0.0, %v1932
    %v1934 = vpop.f32.mrb[0].mxu0
    %v1935 = vadd.f32 0.0, %v1934
    %1936 = vdwg.mxu0
    %v1937 = vmax.f32 %v1899, 0.0
    %v1938 = vmax.f32 %v1901, 0.0
    %v1939 = vmax.f32 %v1903, 0.0
    %v1940 = vmax.f32 %v1905, 0.0
    %v1941 = vmax.f32 %v1909, 0.0
    %v1942 = vmax.f32 %v1911, 0.0
    %v1943 = vmax.f32 %v1913, 0.0
    %v1944 = vmax.f32 %v1915, 0.0
    %v1945 = vmax.f32 %v1919, 0.0
    %v1946 = vmax.f32 %v1921, 0.0
    %v1947 = vmax.f32 %v1923, 0.0
    %v1948 = vmax.f32 %v1925, 0.0
    %v1949 = vmax.f32 %v1929, 0.0
    %v1950 = vmax.f32 %v1931, 0.0
    %v1951 = vmax.f32 %v1933, 0.0
    %v1952 = vmax.f32 %v1935, 0.0
    %v1953 = vpack.c.bf16 %v1939, %v1937
    %v1954 = vpack.c.bf16 %v1940, %v1938
    %v1955 = vpack.c.bf16 %v1943, %v1941
    %v1956 = vpack.c.bf16 %v1944, %v1942
    %v1957 = vpack.c.bf16 %v1947, %v1945
    %v1958 = vpack.c.bf16 %v1948, %v1946
    %v1959 = vpack.c.bf16 %v1951, %v1949
    %v1960 = vpack.c.bf16 %v1952, %v1950
    %1961 = vmatprep.subr.bf16.mxu0 %v373
    %1962 = vmatpush1.bf16.msra.mxu0 %v372
    %1963 = vmatprep.subr.bf16.mxu0 %v375
    %1964 = vmatpush1.bf16.msra.mxu0 %v374
    %1965 = vmatprep.subr.bf16.mxu0 %v377
    %1966 = vmatpush1.bf16.msra.mxu0 %v376
    %1967 = vmatprep.subr.bf16.mxu0 %v379
    %1968 = vmatpush1.bf16.msra.mxu0 %v378
    %1969 = vmatprep.subr.bf16.mxu0 %v381
    %1970 = vmatpush1.bf16.msra.mxu0 %v380
    %1971 = vmatprep.subr.bf16.mxu0 %v383
    %1972 = vmatpush1.bf16.msra.mxu0 %v382
    %1973 = vmatprep.subr.bf16.mxu0 %v385
    %1974 = vmatpush1.bf16.msra.mxu0 %v384
    %1975 = vmatprep.subr.bf16.mxu0 %v387
    %1976 = vmatpush1.bf16.msra.mxu0 %v386
    %1977 = vmatprep.subr.bf16.mxu0 %v389
    %1978 = vmatpush1.bf16.msra.mxu0 %v388
    %1979 = vmatprep.subr.bf16.mxu0 %v391
    %1980 = vmatpush1.bf16.msra.mxu0 %v390
    %1981 = vmatprep.subr.bf16.mxu0 %v393
    %1982 = vmatpush1.bf16.msra.mxu0 %v392
    %1983 = vmatprep.subr.bf16.mxu0 %v395
    %1984 = vmatpush1.bf16.msra.mxu0 %v394
    %1985 = vmatprep.subr.bf16.mxu0 %v397
    %1986 = vmatpush1.bf16.msra.mxu0 %v396
    %1987 = vmatprep.subr.bf16.mxu0 %v399
    %1988 = vmatpush1.bf16.msra.mxu0 %v398
    %1989 = vmatprep.subr.bf16.mxu0 %v401
    %1990 = vmatpush1.bf16.msra.mxu0 %v400
    %1991 = vmatprep.subr.bf16.mxu0 %v403
    %1992 = vmatpush1.bf16.msra.mxu0 %v402
    %1993 = vmatprep.mubr.bf16.mxu0 %v1954
    %1994 = vmatmul.mubr.bf16.gmra.mrb[0].mxu0 %v1953
    %v1995 = vpop.f32.mrb[0].mxu0
    %v1996 = vadd.f32 0.0, %v1995
    %v1997 = vpop.f32.mrb[0].mxu0
    %v1998 = vadd.f32 0.0, %v1997
    %v1999 = vpop.f32.mrb[0].mxu0
    %v2000 = vadd.f32 0.0, %v1999
    %v2001 = vpop.f32.mrb[0].mxu0
    %v2002 = vadd.f32 0.0, %v2001
    %2003 = vmatprep.mubr.bf16.mxu0 %v1956
    %2004 = vmatmul.mubr.bf16.gmra.mrb[0].mxu0 %v1955
    %v2005 = vpop.f32.mrb[0].mxu0
    %v2006 = vadd.f32 0.0, %v2005
    %v2007 = vpop.f32.mrb[0].mxu0
    %v2008 = vadd.f32 0.0, %v2007
    %v2009 = vpop.f32.mrb[0].mxu0
    %v2010 = vadd.f32 0.0, %v2009
    %v2011 = vpop.f32.mrb[0].mxu0
    %v2012 = vadd.f32 0.0, %v2011
    %2013 = vmatprep.mubr.bf16.mxu0 %v1958
    %2014 = vmatmul.mubr.bf16.gmra.mrb[0].mxu0 %v1957
    %v2015 = vpop.f32.mrb[0].mxu0
    %v2016 = vadd.f32 0.0, %v2015
    %v2017 = vpop.f32.mrb[0].mxu0
    %v2018 = vadd.f32 0.0, %v2017
    %v2019 = vpop.f32.mrb[0].mxu0
    %v2020 = vadd.f32 0.0, %v2019
    %v2021 = vpop.f32.mrb[0].mxu0
    %v2022 = vadd.f32 0.0, %v2021
    %2023 = vmatprep.mubr.bf16.mxu0 %v1960
    %2024 = vmatmul.mubr.bf16.gmra.mrb[0].mxu0 %v1959
    %v2025 = vpop.f32.mrb[0].mxu0
    %v2026 = vadd.f32 0.0, %v2025
    %v2027 = vpop.f32.mrb[0].mxu0
    %v2028 = vadd.f32 0.0, %v2027
    %v2029 = vpop.f32.mrb[0].mxu0
    %v2030 = vadd.f32 0.0, %v2029
    %v2031 = vpop.f32.mrb[0].mxu0
    %v2032 = vadd.f32 0.0, %v2031
    %2033 = vdwg.mxu0
    %v2034 = vmax.f32 %v1996, %v2016
    %v2035 = vmax.f32 %v1998, %v2018
    %v2036 = vmax.f32 %v2000, %v2020
    %v2037 = vmax.f32 %v2002, %v2022
    %v2038 = vmax.f32 %v2006, %v2026
    %v2039 = vmax.f32 %v2008, %v2028
    %v2040 = vmax.f32 %v2010, %v2030
    %v2041 = vmax.f32 %v2012, %v2032
    %v2042 = vmax.f32 %v1823, %v2034
    %v2043 = vmax.f32 %v1824, %v2035
    %v2044 = vmax.f32 %v1825, %v2036
    %v2045 = vmax.f32 %v1826, %v2037
    %v2046 = vmax.f32 %v1827, %v2038
    %v2047 = vmax.f32 %v1828, %v2039
    %v2048 = vmax.f32 %v1829, %v2040
    %v2049 = vmax.f32 %v1830, %v2041
    %v2050 = vld [vmem:[%s3] ss:$8 sm:$0x3]
    %v2052 = vlaneseq
    %v2053 = vshrl.u32 %v2052, 7
    %v2054 = vsub.s32 0, %v2053
    %v2055 = vrot.slane %v2050, %v2054
    %v2056 = vlaneseq
    %v2057 = vshrl.u32 %v2056, 7
    %v2058 = vsub.s32 1, %v2057
    %v2059 = vrot.slane %v2050, %v2058
    %v2062 = vadd.f32 %v2042, %v2055
    %v2063 = vadd.f32 %v2043, %v2059
    %v2064 = vadd.f32 %v2044, %v2055
    %v2065 = vadd.f32 %v2045, %v2059
    %v2066 = vadd.f32 %v2046, %v2055
    %v2067 = vadd.f32 %v2047, %v2059
    %v2068 = vadd.f32 %v2048, %v2055
    %v2069 = vadd.f32 %v2049, %v2059
    %v2070 = vmax.f32 %v2062, 0.0
    %v2071 = vmax.f32 %v2063, 0.0
    %v2072 = vmax.f32 %v2064, 0.0
    %v2073 = vmax.f32 %v2065, 0.0
    %v2074 = vmax.f32 %v2066, 0.0
    %v2075 = vmax.f32 %v2067, 0.0
    %v2076 = vmax.f32 %v2068, 0.0
    %v2077 = vmax.f32 %v2069, 0.0
    %2078 = vst [vmem:[#allocation2] sm:$0xff] %v2070
    %2079 = vst [vmem:[#allocation2 + $0x8] sm:$0xff] %v2071
    %2080 = vst [vmem:[#allocation2 + $0x10] sm:$0xff] %v2072
    %2081 = vst [vmem:[#allocation2 + $0x18] sm:$0xff] %v2073
    %2082 = vst [vmem:[#allocation2 + $0x20] sm:$0xff] %v2074
    %2083 = vst [vmem:[#allocation2 + $0x28] sm:$0xff] %v2075
    %2084 = vst [vmem:[#allocation2 + $0x30] sm:$0xff] %v2076
    %2085 = vst [vmem:[#allocation2 + $0x38] sm:$0xff] %v2077
    // Predicated region
    $region18: #{cloudcrop_forward.1} parent=1 // pred_check
      _
    $region19: #{cloudcrop_forward.1} parent=1 // pred_check_branch
      %2087 = sbr.rel (0) target = $region21
    $region20: #{cloudcrop_forward.1} parent=1 // pred_region
      %s2089 = ssub.s32 1024, 1024
      %2090 = vsyncadd [#allocation3], %s2089
      %s2091 = sshll.u32 [#allocation2], 4
      %s2092 = int_to_ptr.vmem [resolvable:$true] %s2091
      %2097 = dma.vmem_to_hbm [thread:$0]  %s2092, 1024, %s4, [#allocation3], 256, 256, 16
    $region21: #{cloudcrop_forward.1} parent=1 // pred_fallthru
      _
    // Predicated region
    $region22: #{cloudcrop_forward.1} parent=1 // pred_check
      _
    $region23: #{cloudcrop_forward.1} parent=1 // pred_check_branch
      %2099 = sbr.rel (0) target = $region25
    $region24: #{cloudcrop_forward.1} parent=1 // pred_region
      %2100 = dma.done [#allocation3], 1024
    $region25: #{cloudcrop_forward.1} parent=1 // pred_fallthru
      _
    %2101 = vsyncpa [#allocation3], 1

</llo_original>
